<compile_context>
chip_gen: v7x
topology: tpu7x:2x2x1
jax: 0.10.0
libtpu: 0.0.40
codegen_flags: <defaults>
</compile_context>

<pallas_src>
import functools
import math
from dataclasses import dataclass

import jax
import jax.numpy as jnp
from jax.experimental import pallas as pl
from jax.experimental.pallas import tpu as pltpu


@dataclass(frozen=True)
class LineMatcherCfg:
    cross_check: bool = True
    num_samples: int = 5
    min_dist_pts: int = 8
    top_k_candidates: int = 10
    grid_size: int = 8
    line_score: bool = False


def _round_up(x, m):
    return (x + m - 1) // m * m


# --------------------------------------------------------------------------
# Pallas kernel 1: masked descriptor correlation (tiled matmul + -1 masking)
# --------------------------------------------------------------------------
def _scores_kernel(d1_ref, d2_ref, v1_ref, v2_ref, o_ref):
    # d1: (tm, D) bf16, d2: (D, tn) bf16, v1: (tm, 1) f32, v2: (1, tn) f32
    s = jnp.dot(d1_ref[...], d2_ref[...], preferred_element_type=jnp.float32)
    mask = (v1_ref[...] > 0.5) & (v2_ref[...] > 0.5)   # (tm,1)&(1,tn)->(tm,tn)
    # bf16 store: -1.0 is exactly representable, so downstream '!= -1'
    # validity checks stay exact while the dominant HBM stream (the output
    # writeback) is halved.
    o_ref[...] = jnp.where(mask, s, -1.0).astype(o_ref.dtype)


def masked_scores(d1, d2, valid1, valid2, num_samples, *, tile_m=480, tile_n=1920):
    """d1: (P1, D), d2: (D, P2) f32, valid{1,2}: bool (P1,), (P2,).

    Returns a line-aligned padded (P1p, P2p) bf16 score matrix (padding = -1)
    plus (N1p, N2p) = (P1p, P2p)/num_samples so the caller can reshape to
    (N1p, ns, N2p, ns) with zero data movement.
    """
    P1, D = d1.shape
    P2 = d2.shape[1]
    ns = num_samples
    # Tile granularities: output sublanes must be multiples of 16 (bf16
    # packing), lanes multiples of 128, and both line-aligned (multiples of
    # ns) so the padded result splits straight into (N1p, ns, N2p, ns).
    g1 = 16 * ns // math.gcd(16, ns)
    g2 = 128 * ns // math.gcd(128, ns)
    tm = min(_round_up(tile_m, g1), _round_up(P1, g1))
    tn = min(_round_up(tile_n, g2), _round_up(P2, g2))
    P1p = _round_up(P1, tm)
    P2p = _round_up(P2, tn)

    d1p = jnp.zeros((P1p, D), jnp.bfloat16).at[:P1].set(d1.astype(jnp.bfloat16))
    d2p = jnp.zeros((D, P2p), jnp.bfloat16).at[:, :P2].set(d2.astype(jnp.bfloat16))
    v1p = jnp.zeros((P1p, 1), jnp.float32).at[:P1, 0].set(valid1.astype(jnp.float32))
    v2p = jnp.zeros((1, P2p), jnp.float32).at[0, :P2].set(valid2.astype(jnp.float32))

    grid = (P1p // tm, P2p // tn)
    cost = pl.CostEstimate(
        flops=2 * P1p * P2p * D,
        transcendentals=0,
        bytes_accessed=(d1p.size + d2p.size) * 2 + (v1p.size + v2p.size) * 4
        + P1p * P2p * 2,
    )
    # TODO(synk): the per-line max reductions downstream could be fused as
    # extra kernel outputs (tm/tn are ns-aligned) to save two more HBM passes.
    out = pl.pallas_call(
        _scores_kernel,
        out_shape=jax.ShapeDtypeStruct((P1p, P2p), jnp.bfloat16),
        grid=grid,
        in_specs=[
            pl.BlockSpec((tm, D), lambda i, j: (i, 0)),
            pl.BlockSpec((D, tn), lambda i, j: (0, j)),
            pl.BlockSpec((tm, 1), lambda i, j: (i, 0)),
            pl.BlockSpec((1, tn), lambda i, j: (0, j)),
        ],
        out_specs=pl.BlockSpec((tm, tn), lambda i, j: (i, j)),
        compiler_params=pltpu.CompilerParams(
            dimension_semantics=("parallel", "parallel"),
            # Deliberate cap: ~6 MiB of live buffers (double-buffered bf16
            # output tiles + small inputs) -- fits v5e's 16 MiB scoped default
            # and stays well under v7x's 32 MiB scoped / 64 MiB physical VMEM.
            vmem_limit_bytes=32 * 1024 * 1024,
        ),
        cost_estimate=cost,
    )(d1p, d2p, v1p, v2p)
    return out, (P1p // ns, P2p // ns)


# --------------------------------------------------------------------------
# Pallas kernel 2: batched Needleman-Wunsch DP (forward + column-flipped)
# --------------------------------------------------------------------------
_NW_SUB = 8         # sublanes per DP vreg
_NW_LANE = 128      # lanes per DP vreg
_NW_MAX_CHUNKS = 8  # up to 8 x (8,128) chunks (8192 batch elems) per grid step


def _nw_kernel(s_ref, o_ref, *, n, m, gap, sub_chunks):
    # s_ref: (n*m, bs, 128) f32; row i*m+j holds scores[:, i, j], batch-minor.
    # o_ref: (2, bs, 128) f32 -- [0] forward DP, [1] column-flipped DP.
    # Loop over 8-sublane chunks so the live DP frontier stays ~2*(m+1)+2
    # vregs; the forward and flipped recurrences are interleaved, giving two
    # independent dependence chains of ILP for the VPU.
    @pl.loop(0, sub_chunks)
    def _chunk(c):
        off = pl.multiple_of(c * _NW_SUB, _NW_SUB)
        zero = jnp.zeros((_NW_SUB, _NW_LANE), jnp.float32)
        prev_f = [zero] * (m + 1)
        prev_r = [zero] * (m + 1)
        for i in range(n):
            cur_f = [zero]
            cur_r = [zero]
            for j in range(m):
                s_f = s_ref[i * m + j, pl.ds(off, _NW_SUB), :] - gap
                s_r = s_ref[i * m + (m - 1 - j), pl.ds(off, _NW_SUB), :] - gap
                cur_f.append(jnp.maximum(jnp.maximum(cur_f[j], prev_f[j + 1]),
                                         prev_f[j] + s_f))
                cur_r.append(jnp.maximum(jnp.maximum(cur_r[j], prev_r[j + 1]),
                                         prev_r[j] + s_r))
            prev_f = cur_f
            prev_r = cur_r
        o_ref[0, pl.ds(off, _NW_SUB), :] = prev_f[m]
        o_ref[1, pl.ds(off, _NW_SUB), :] = prev_r[m]


def needleman_wunsch_fwd_flip(s_bm, n, m, gap=0.1):
    """s_bm: (n*m, B) batch-minor DP inputs -> ((B,) forward, (B,) flipped)."""
    nm, B = s_bm.shape
    s_total = _round_up(pl.cdiv(B, _NW_LANE), _NW_SUB)      # batch sublanes
    n_chunks = s_total // _NW_SUB
    # Pack up to 8 chunks per grid step to amortize the ~0.35us per-step
    # pipeline overhead, but keep >=2 grid steps when there is enough work so
    # both v7x TensorCores are used on the "parallel" axis.
    chunks_per_step = min(_NW_MAX_CHUNKS, max(1, n_chunks // 2)) if n_chunks > 1 else 1
    bs = chunks_per_step * _NW_SUB
    s_pad = _round_up(s_total, bs)
    Bp = s_pad * _NW_LANE

    s_in = jnp.pad(s_bm.astype(jnp.float32), ((0, 0), (0, Bp - B)))
    s_in = s_in.reshape(nm, s_pad, _NW_LANE)
    out = pl.pallas_call(
        functools.partial(_nw_kernel, n=n, m=m, gap=gap,
                          sub_chunks=chunks_per_step),
        out_shape=jax.ShapeDtypeStruct((2, s_pad, _NW_LANE), jnp.float32),
        grid=(s_pad // bs,),
        in_specs=[pl.BlockSpec((nm, bs, _NW_LANE), lambda t: (0, t, 0))],
        out_specs=pl.BlockSpec((2, bs, _NW_LANE), lambda t: (0, t, 0)),
        compiler_params=pltpu.CompilerParams(
            dimension_semantics=("parallel",)),
    )(s_in)
    out = out.reshape(2, Bp)
    return out[0, :B], out[1, :B]


# --------------------------------------------------------------------------
# Plain-JAX glue (sampling, bilinear grid_sample gather, top-k bookkeeping)
# --------------------------------------------------------------------------
def sample_line_points(line_seg, num_samples, min_dist_pts):
    start = line_seg[:, 0]
    end = line_seg[:, 1]
    length = jnp.linalg.norm(start - end, axis=1)
    n_samp = jnp.clip(jnp.floor(length / min_dist_pts), 2, num_samples)
    k = jnp.arange(num_samples, dtype=jnp.float32)
    valid = k[None, :] < n_samp[:, None]
    t = k[None, :] / (n_samp[:, None] - 1.0)
    pts = start[:, None, :] + t[..., None] * (end - start)[:, None, :]
    pts = jnp.where(valid[..., None], pts, 0.0)   # torch pads with zeros
    return pts, valid


def sample_descriptors(desc, pts, img_size, *, points_major):
    """Bilinear grid_sample (align_corners=False, zero padding) + L2 normalize.

    points_major=True returns (P, D) (no big transpose before the matmul
    kernel); points_major=False returns (D, P).
    """
    # TODO(synk): data-dependent bilinear gather kept in plain JAX (no clean
    # Pallas gather for arbitrary point lists).
    H, W = img_size
    d = desc[0]
    D, Hd, Wd = d.shape
    x = pts[:, 1]
    y = pts[:, 0]
    xn = 2.0 * x / (W - 1) - 1.0          # kornia normalize_pixel_coordinates
    yn = 2.0 * y / (H - 1) - 1.0
    fx = ((xn + 1.0) * Wd - 1.0) / 2.0    # grid_sample, align_corners=False
    fy = ((yn + 1.0) * Hd - 1.0) / 2.0
    x0 = jnp.floor(fx)
    y0 = jnp.floor(fy)
    wx1 = fx - x0
    wx0 = 1.0 - wx1
    wy1 = fy - y0
    wy0 = 1.0 - wy1

    if points_major:
        dmap = jnp.transpose(d, (1, 2, 0))        # (Hd, Wd, D), small one-time

        def gather(yy, xx):
            inb = (yy >= 0) & (yy <= Hd - 1) & (xx >= 0) & (xx <= Wd - 1)
            yc = jnp.clip(yy, 0, Hd - 1).astype(jnp.int32)
            xc = jnp.clip(xx, 0, Wd - 1).astype(jnp.int32)
            return jnp.where(inb[:, None], dmap[yc, xc], 0.0)   # (P, D)

        out = (gather(y0, x0) * (wy0 * wx0)[:, None]
               + gather(y0, x0 + 1) * (wy0 * wx1)[:, None]
               + gather(y0 + 1, x0) * (wy1 * wx0)[:, None]
               + gather(y0 + 1, x0 + 1) * (wy1 * wx1)[:, None])
        norm = jnp.sqrt(jnp.sum(out * out, axis=1, keepdims=True))
        return out / jnp.maximum(norm, 1e-12)                   # (P, D)

    def gather(yy, xx):
        inb = (yy >= 0) & (yy <= Hd - 1) & (xx >= 0) & (xx <= Wd - 1)
        yc = jnp.clip(yy, 0, Hd - 1).astype(jnp.int32)
        xc = jnp.clip(xx, 0, Wd - 1).astype(jnp.int32)
        return jnp.where(inb[None, :], d[:, yc, xc], 0.0)       # (D, P)

    out = (gather(y0, x0) * (wy0 * wx0)[None, :]
           + gather(y0, x0 + 1) * (wy0 * wx1)[None, :]
           + gather(y0 + 1, x0) * (wy1 * wx0)[None, :]
           + gather(y0 + 1, x0 + 1) * (wy1 * wx1)[None, :])
    norm = jnp.sqrt(jnp.sum(out * out, axis=0, keepdims=True))
    return out / jnp.maximum(norm, 1e-12)                       # (D, P)


def wunsch_line_matcher(line_seg1, line_seg2, desc1, desc2, cfg: LineMatcherCfg):
    img_size1 = (desc1.shape[2] * cfg.grid_size, desc1.shape[3] * cfg.grid_size)
    img_size2 = (desc2.shape[2] * cfg.grid_size, desc2.shape[3] * cfg.grid_size)
    n1 = line_seg1.shape[0]
    n2 = line_seg2.shape[0]
    if n1 == 0:
        return jnp.zeros((0,), jnp.int32)
    if n2 == 0:
        return -jnp.ones((n1,), jnp.int32)
    ns = cfg.num_samples

    pts1, valid1 = sample_line_points(line_seg1, ns, cfg.min_dist_pts)
    pts2, valid2 = sample_line_points(line_seg2, ns, cfg.min_dist_pts)
    d1 = sample_descriptors(desc1, pts1.reshape(-1, 2), img_size1, points_major=True)   # (P1, D)
    d2 = sample_descriptors(desc2, pts2.reshape(-1, 2), img_size2, points_major=False)  # (D, P2)

    scores_p, (n1p, n2p) = masked_scores(
        d1, d2, valid1.reshape(-1), valid2.reshape(-1), ns)
    # Free dims-split reshape (no relayout): axes are (line1, i, line2, j),
    # padded lines (>= n1 / n2) are all -1.
    scores4 = scores_p.reshape(n1p, ns, n2p, ns)

    # Per-line matching scores in the kernel's native layout (max in bf16 is
    # exact; accumulate the small reduced tensors in f32).
    ls1 = jnp.max(scores4, axis=3)                              # (n1p, ns, n2p)
    v1 = ls1 != -1.0
    ls1 = (jnp.sum(ls1.astype(jnp.float32) * v1, axis=1)
           / jnp.maximum(jnp.sum(v1, axis=1), 1))
    ls2 = jnp.max(scores4, axis=1)                              # (n1p, n2p, ns)
    v2 = ls2 != -1.0
    ls2 = (jnp.sum(ls2.astype(jnp.float32) * v2, axis=2)
           / jnp.maximum(jnp.sum(v2, axis=2), 1))
    line_scores = 0.5 * (ls1 + ls2)                             # (n1p, n2p)

    # Forward direction: top-k candidate img2 lines per img1 line.
    k1 = min(cfg.top_k_candidates, n2)
    col_ok = jnp.arange(n2p) < n2
    topk1 = jax.lax.top_k(jnp.where(col_ok[None, :], line_scores, -jnp.inf),
                          k1)[1][:, ::-1]                       # (n1p, k1) asc.
    top1 = jnp.take_along_axis(scores4, topk1[:, None, :, None], axis=2)[:n1]
    # (n1, ns_i, k1, ns_j) -> DP rows i, cols j, batch (line1, cand) minor.
    s_fwd = jnp.transpose(top1, (1, 3, 0, 2)).reshape(ns * ns, n1 * k1)
    s_fwd = s_fwd.astype(jnp.float32)
    b1 = n1 * k1

    if cfg.cross_check:
        k2 = min(cfg.top_k_candidates, n1)
        row_ok = jnp.arange(n1p) < n1
        ls_t = jnp.where(row_ok[:, None], line_scores, -jnp.inf).T   # (n2p, n1p)
        topk2 = jax.lax.top_k(ls_t, k2)[1][:, ::-1]                  # (n2p, k2)
        idx2 = jnp.swapaxes(topk2, 0, 1)[:, None, :, None]           # (k2,1,n2p,1)
        top2 = jnp.take_along_axis(scores4, idx2, axis=0)[:, :, :n2]  # (k2,ns_i,n2,ns_j)
        # Cross DP matrices are (j, i) oriented, exactly as in the reference.
        s_bwd = jnp.transpose(top2, (3, 1, 2, 0)).reshape(ns * ns, n2 * k2)
        s_all = jnp.concatenate([s_fwd, s_bwd.astype(jnp.float32)], axis=1)
    else:
        s_all = s_fwd

    # One NW launch computes forward + flipped scores for both directions.
    nw_fwd, nw_flip = needleman_wunsch_fwd_flip(s_all, ns, ns)

    nw1 = jnp.concatenate([nw_fwd[:b1].reshape(n1, k1),
                           nw_flip[:b1].reshape(n1, k1)], axis=1)    # (n1, 2k1)
    best1 = jnp.argmax(nw1, axis=1) % k1
    matches = topk1[:n1][jnp.arange(n1), best1]

    if cfg.cross_check:
        nw2 = jnp.concatenate([nw_fwd[b1:].reshape(n2, k2),
                               nw_flip[b1:].reshape(n2, k2)], axis=1)
        best2 = jnp.argmax(nw2, axis=1) % k2
        matches2 = topk2[:n2][jnp.arange(n2), best2]
        mutual = matches2[matches] == jnp.arange(n1)
        matches = jnp.where(mutual, matches, -1)
    return matches.astype(jnp.int32)


if __name__ == "__main__":
    key = jax.random.PRNGKey(0)
    k1, k2, k3, k4 = jax.random.split(key, 4)
    cfg = LineMatcherCfg()

    Hd = Wd = 16
    D = 32
    N1, N2 = 8, 6
    H = Hd * cfg.grid_size  # 128

    line_seg1 = jax.random.uniform(k1, (N1, 2, 2), jnp.float32, 0.0, H - 1.0)
    line_seg2 = jax.random.uniform(k2, (N2, 2, 2), jnp.float32, 0.0, H - 1.0)
    desc1 = jax.random.normal(k3, (1, D, Hd, Wd), jnp.float32)
    desc2 = jax.random.normal(k4, (1, D, Hd, Wd), jnp.float32)

    matcher = jax.jit(wunsch_line_matcher, static_argnames=("cfg",))
    matches = matcher(line_seg1, line_seg2, desc1, desc2, cfg=cfg)
    jax.block_until_ready(matches)
    assert matches.shape == (N1,) and matches.dtype == jnp.int32
    print("KERNEL_OK")
</pallas_src>

<mosaic_0001>
module attributes {stable_mosaic.version = 11 : i64} {
  func.func @_scores_kernel(%arg0: i32, %arg1: i32, %arg2: memref<80x32xbf16, #tpu.memory_space<vmem>>, %arg3: memref<32x640xbf16, #tpu.memory_space<vmem>>, %arg4: memref<80x1xf32, #tpu.memory_space<vmem>>, %arg5: memref<1x640xf32, #tpu.memory_space<vmem>>, %arg6: memref<80x640xbf16, #tpu.memory_space<vmem>>) attributes {dimension_semantics = [#tpu.dimension_semantics<parallel>, #tpu.dimension_semantics<parallel>], iteration_bounds = array<i64: 1, 1>, scalar_prefetch = 0 : i64, scratch_operands = 0 : i64, tpu.core_type = #tpu.core_type<tc>, window_params = [{transform_indices = @transform_0, window_bounds = array<i64: 80, 32>}, {transform_indices = @transform_1, window_bounds = array<i64: 32, 640>}, {transform_indices = @transform_2, window_bounds = array<i64: 80, 1>}, {transform_indices = @transform_3, window_bounds = array<i64: 1, 640>}, {transform_indices = @transform_4, window_bounds = array<i64: 80, 640>}]} {
    %c0 = arith.constant 0 : index
    %c0_0 = arith.constant 0 : index
    %0 = vector.load %arg2[%c0, %c0_0] : memref<80x32xbf16, #tpu.memory_space<vmem>>, vector<80x32xbf16>
    %c0_1 = arith.constant 0 : index
    %c0_2 = arith.constant 0 : index
    %1 = vector.load %arg3[%c0_1, %c0_2] : memref<32x640xbf16, #tpu.memory_space<vmem>>, vector<32x640xbf16>
    %cst = arith.constant dense<0.000000e+00> : vector<80x640xf32>
    %2 = tpu.matmul %0, %1, %cst {dimension_numbers = #tpu.dot_dimension_numbers<[1], [0], [0], [1], [0, 0, 1, 1], [], []>} : vector<80x32xbf16>, vector<32x640xbf16>, vector<80x640xf32> -> vector<80x640xf32>
    %c0_3 = arith.constant 0 : index
    %c0_4 = arith.constant 0 : index
    %3 = vector.load %arg4[%c0_3, %c0_4] : memref<80x1xf32, #tpu.memory_space<vmem>>, vector<80x1xf32>
    %cst_5 = arith.constant 5.000000e-01 : f32
    %4 = vector.broadcast %cst_5 : f32 to vector<80x1xf32>
    %5 = arith.cmpf ogt, %3, %4 : vector<80x1xf32>
    %c0_6 = arith.constant 0 : index
    %c0_7 = arith.constant 0 : index
    %6 = vector.load %arg5[%c0_6, %c0_7] : memref<1x640xf32, #tpu.memory_space<vmem>>, vector<1x640xf32>
    %cst_8 = arith.constant 5.000000e-01 : f32
    %7 = vector.broadcast %cst_8 : f32 to vector<1x640xf32>
    %8 = arith.cmpf ogt, %6, %7 : vector<1x640xf32>
    %9 = vector.broadcast %5 : vector<80x1xi1> to vector<80x640xi1>
    %10 = vector.broadcast %8 : vector<1x640xi1> to vector<80x640xi1>
    %11 = arith.andi %9, %10 : vector<80x640xi1>
    %cst_9 = arith.constant -1.000000e+00 : f32
    %12 = vector.broadcast %cst_9 : f32 to vector<80x640xf32>
    %13 = arith.select %11, %2, %12 : vector<80x640xi1>, vector<80x640xf32>
    %14 = arith.truncf %13 : vector<80x640xf32> to vector<80x640xbf16>
    %c0_10 = arith.constant 0 : index
    %c0_11 = arith.constant 0 : index
    %15 = vector.load %arg6[%c0_10, %c0_11] : memref<80x640xbf16, #tpu.memory_space<vmem>>, vector<80x640xbf16>
    tpu.vector_store %arg6[%c0_10, %c0_11], %14 {strides = array<i32>} : memref<80x640xbf16, #tpu.memory_space<vmem>>, vector<80x640xbf16>,
    return
  }
  func.func @transform_0(%arg0: i32, %arg1: i32) -> (i32, i32) {
    %c0_i32 = arith.constant 0 : i32
    %c0_i32_0 = arith.constant 0 : i32
    return %arg0, %c0_i32 : i32, i32
  }
  func.func @transform_1(%arg0: i32, %arg1: i32) -> (i32, i32) {
    %c0_i32 = arith.constant 0 : i32
    %c0_i32_0 = arith.constant 0 : i32
    return %c0_i32, %arg1 : i32, i32
  }
  func.func @transform_2(%arg0: i32, %arg1: i32) -> (i32, i32) {
    %c0_i32 = arith.constant 0 : i32
    %c0_i32_0 = arith.constant 0 : i32
    return %arg0, %c0_i32 : i32, i32
  }
  func.func @transform_3(%arg0: i32, %arg1: i32) -> (i32, i32) {
    %c0_i32 = arith.constant 0 : i32
    %c0_i32_0 = arith.constant 0 : i32
    return %c0_i32, %arg1 : i32, i32
  }
  func.func @transform_4(%arg0: i32, %arg1: i32) -> (i32, i32) {
    %c0_i32 = arith.constant 0 : i32
    return %arg0, %arg1 : i32, i32
  }
}

module attributes {stable_mosaic.version = 11 : i64} {
  func.func @_nw_kernel(%arg0: i32, %arg1: memref<25x8x128xf32, #tpu.memory_space<vmem>>, %arg2: memref<2x8x128xf32, #tpu.memory_space<vmem>>) attributes {dimension_semantics = [#tpu.dimension_semantics<parallel>], iteration_bounds = array<i64: 1>, scalar_prefetch = 0 : i64, scratch_operands = 0 : i64, tpu.core_type = #tpu.core_type<tc>, window_params = [{transform_indices = @transform_0, window_bounds = array<i64: 25, 8, 128>}, {transform_indices = @transform_1, window_bounds = array<i64: 2, 8, 128>}]} {
    %c0_i32 = arith.constant 0 : i32
    %c1_i32 = arith.constant 1 : i32
    %0 = arith.muli %c0_i32, %c1_i32 : i32
    %c0_i32_0 = arith.constant 0 : i32
    %1 = arith.addi %c0_i32_0, %0 : i32
    %c8_i32 = arith.constant 8 : i32
    %2 = arith.muli %1, %c8_i32 : i32
    %3 = tpu.assume_multiple %2, 8 : i32
    %cst = arith.constant 0.000000e+00 : f32
    %4 = vector.broadcast %cst : f32 to vector<8x128xf32>
    %c0 = arith.constant 0 : index
    %5 = arith.index_cast %3 : i32 to index
    %c0_1 = arith.constant 0 : index
    %6 = vector.load %arg1[%c0, %5, %c0_1] : memref<25x8x128xf32, #tpu.memory_space<vmem>>, vector<1x8x128xf32>
    %7 = vector.shape_cast %6 : vector<1x8x128xf32> to vector<8x128xf32>
    %cst_2 = arith.constant 1.000000e-01 : f32
    %8 = vector.broadcast %cst_2 : f32 to vector<8x128xf32>
    %9 = arith.subf %7, %8 : vector<8x128xf32>
    %c4 = arith.constant 4 : index
    %10 = arith.index_cast %3 : i32 to index
    %c0_3 = arith.constant 0 : index
    %11 = vector.load %arg1[%c4, %10, %c0_3] : memref<25x8x128xf32, #tpu.memory_space<vmem>>, vector<1x8x128xf32>
    %12 = vector.shape_cast %11 : vector<1x8x128xf32> to vector<8x128xf32>
    %cst_4 = arith.constant 1.000000e-01 : f32
    %13 = vector.broadcast %cst_4 : f32 to vector<8x128xf32>
    %14 = arith.subf %12, %13 : vector<8x128xf32>
    %15 = arith.maximumf %4, %4 : vector<8x128xf32>
    %16 = arith.addf %4, %9 : vector<8x128xf32>
    %17 = arith.maximumf %15, %16 : vector<8x128xf32>
    %18 = arith.maximumf %4, %4 : vector<8x128xf32>
    %19 = arith.addf %4, %14 : vector<8x128xf32>
    %20 = arith.maximumf %18, %19 : vector<8x128xf32>
    %c1 = arith.constant 1 : index
    %21 = arith.index_cast %3 : i32 to index
    %c0_5 = arith.constant 0 : index
    %22 = vector.load %arg1[%c1, %21, %c0_5] : memref<25x8x128xf32, #tpu.memory_space<vmem>>, vector<1x8x128xf32>
    %23 = vector.shape_cast %22 : vector<1x8x128xf32> to vector<8x128xf32>
    %cst_6 = arith.constant 1.000000e-01 : f32
    %24 = vector.broadcast %cst_6 : f32 to vector<8x128xf32>
    %25 = arith.subf %23, %24 : vector<8x128xf32>
    %c3 = arith.constant 3 : index
    %26 = arith.index_cast %3 : i32 to index
    %c0_7 = arith.constant 0 : index
    %27 = vector.load %arg1[%c3, %26, %c0_7] : memref<25x8x128xf32, #tpu.memory_space<vmem>>, vector<1x8x128xf32>
    %28 = vector.shape_cast %27 : vector<1x8x128xf32> to vector<8x128xf32>
    %cst_8 = arith.constant 1.000000e-01 : f32
    %29 = vector.broadcast %cst_8 : f32 to vector<8x128xf32>
    %30 = arith.subf %28, %29 : vector<8x128xf32>
    %31 = arith.maximumf %17, %4 : vector<8x128xf32>
    %32 = arith.addf %4, %25 : vector<8x128xf32>
    %33 = arith.maximumf %31, %32 : vector<8x128xf32>
    %34 = arith.maximumf %20, %4 : vector<8x128xf32>
    %35 = arith.addf %4, %30 : vector<8x128xf32>
    %36 = arith.maximumf %34, %35 : vector<8x128xf32>
    %c2 = arith.constant 2 : index
    %37 = arith.index_cast %3 : i32 to index
    %c0_9 = arith.constant 0 : index
    %38 = vector.load %arg1[%c2, %37, %c0_9] : memref<25x8x128xf32, #tpu.memory_space<vmem>>, vector<1x8x128xf32>
    %39 = vector.shape_cast %38 : vector<1x8x128xf32> to vector<8x128xf32>
    %cst_10 = arith.constant 1.000000e-01 : f32
    %40 = vector.broadcast %cst_10 : f32 to vector<8x128xf32>
    %41 = arith.subf %39, %40 : vector<8x128xf32>
    %c2_11 = arith.constant 2 : index
    %42 = arith.index_cast %3 : i32 to index
    %c0_12 = arith.constant 0 : index
    %43 = vector.load %arg1[%c2_11, %42, %c0_12] : memref<25x8x128xf32, #tpu.memory_space<vmem>>, vector<1x8x128xf32>
    %44 = vector.shape_cast %43 : vector<1x8x128xf32> to vector<8x128xf32>
    %cst_13 = arith.constant 1.000000e-01 : f32
    %45 = vector.broadcast %cst_13 : f32 to vector<8x128xf32>
    %46 = arith.subf %44, %45 : vector<8x128xf32>
    %47 = arith.maximumf %33, %4 : vector<8x128xf32>
    %48 = arith.addf %4, %41 : vector<8x128xf32>
    %49 = arith.maximumf %47, %48 : vector<8x128xf32>
    %50 = arith.maximumf %36, %4 : vector<8x128xf32>
    %51 = arith.addf %4, %46 : vector<8x128xf32>
    %52 = arith.maximumf %50, %51 : vector<8x128xf32>
    %c3_14 = arith.constant 3 : index
    %53 = arith.index_cast %3 : i32 to index
    %c0_15 = arith.constant 0 : index
    %54 = vector.load %arg1[%c3_14, %53, %c0_15] : memref<25x8x128xf32, #tpu.memory_space<vmem>>, vector<1x8x128xf32>
    %55 = vector.shape_cast %54 : vector<1x8x128xf32> to vector<8x128xf32>
    %cst_16 = arith.constant 1.000000e-01 : f32
    %56 = vector.broadcast %cst_16 : f32 to vector<8x128xf32>
    %57 = arith.subf %55, %56 : vector<8x128xf32>
    %c1_17 = arith.constant 1 : index
    %58 = arith.index_cast %3 : i32 to index
    %c0_18 = arith.constant 0 : index
    %59 = vector.load %arg1[%c1_17, %58, %c0_18] : memref<25x8x128xf32, #tpu.memory_space<vmem>>, vector<1x8x128xf32>
    %60 = vector.shape_cast %59 : vector<1x8x128xf32> to vector<8x128xf32>
    %cst_19 = arith.constant 1.000000e-01 : f32
    %61 = vector.broadcast %cst_19 : f32 to vector<8x128xf32>
    %62 = arith.subf %60, %61 : vector<8x128xf32>
    %63 = arith.maximumf %49, %4 : vector<8x128xf32>
    %64 = arith.addf %4, %57 : vector<8x128xf32>
    %65 = arith.maximumf %63, %64 : vector<8x128xf32>
    %66 = arith.maximumf %52, %4 : vector<8x128xf32>
    %67 = arith.addf %4, %62 : vector<8x128xf32>
    %68 = arith.maximumf %66, %67 : vector<8x128xf32>
    %c4_20 = arith.constant 4 : index
    %69 = arith.index_cast %3 : i32 to index
    %c0_21 = arith.constant 0 : index
    %70 = vector.load %arg1[%c4_20, %69, %c0_21] : memref<25x8x128xf32, #tpu.memory_space<vmem>>, vector<1x8x128xf32>
    %71 = vector.shape_cast %70 : vector<1x8x128xf32> to vector<8x128xf32>
    %cst_22 = arith.constant 1.000000e-01 : f32
    %72 = vector.broadcast %cst_22 : f32 to vector<8x128xf32>
    %73 = arith.subf %71, %72 : vector<8x128xf32>
    %c0_23 = arith.constant 0 : index
    %74 = arith.index_cast %3 : i32 to index
    %c0_24 = arith.constant 0 : index
    %75 = vector.load %arg1[%c0_23, %74, %c0_24] : memref<25x8x128xf32, #tpu.memory_space<vmem>>, vector<1x8x128xf32>
    %76 = vector.shape_cast %75 : vector<1x8x128xf32> to vector<8x128xf32>
    %cst_25 = arith.constant 1.000000e-01 : f32
    %77 = vector.broadcast %cst_25 : f32 to vector<8x128xf32>
    %78 = arith.subf %76, %77 : vector<8x128xf32>
    %79 = arith.maximumf %65, %4 : vector<8x128xf32>
    %80 = arith.addf %4, %73 : vector<8x128xf32>
    %81 = arith.maximumf %79, %80 : vector<8x128xf32>
    %82 = arith.maximumf %68, %4 : vector<8x128xf32>
    %83 = arith.addf %4, %78 : vector<8x128xf32>
    %84 = arith.maximumf %82, %83 : vector<8x128xf32>
    %c5 = arith.constant 5 : index
    %85 = arith.index_cast %3 : i32 to index
    %c0_26 = arith.constant 0 : index
    %86 = vector.load %arg1[%c5, %85, %c0_26] : memref<25x8x128xf32, #tpu.memory_space<vmem>>, vector<1x8x128xf32>
    %87 = vector.shape_cast %86 : vector<1x8x128xf32> to vector<8x128xf32>
    %cst_27 = arith.constant 1.000000e-01 : f32
    %88 = vector.broadcast %cst_27 : f32 to vector<8x128xf32>
    %89 = arith.subf %87, %88 : vector<8x128xf32>
    %c9 = arith.constant 9 : index
    %90 = arith.index_cast %3 : i32 to index
    %c0_28 = arith.constant 0 : index
    %91 = vector.load %arg1[%c9, %90, %c0_28] : memref<25x8x128xf32, #tpu.memory_space<vmem>>, vector<1x8x128xf32>
    %92 = vector.shape_cast %91 : vector<1x8x128xf32> to vector<8x128xf32>
    %cst_29 = arith.constant 1.000000e-01 : f32
    %93 = vector.broadcast %cst_29 : f32 to vector<8x128xf32>
    %94 = arith.subf %92, %93 : vector<8x128xf32>
    %95 = arith.maximumf %4, %17 : vector<8x128xf32>
    %96 = arith.addf %4, %89 : vector<8x128xf32>
    %97 = arith.maximumf %95, %96 : vector<8x128xf32>
    %98 = arith.maximumf %4, %20 : vector<8x128xf32>
    %99 = arith.addf %4, %94 : vector<8x128xf32>
    %100 = arith.maximumf %98, %99 : vector<8x128xf32>
    %c6 = arith.constant 6 : index
    %101 = arith.index_cast %3 : i32 to index
    %c0_30 = arith.constant 0 : index
    %102 = vector.load %arg1[%c6, %101, %c0_30] : memref<25x8x128xf32, #tpu.memory_space<vmem>>, vector<1x8x128xf32>
    %103 = vector.shape_cast %102 : vector<1x8x128xf32> to vector<8x128xf32>
    %cst_31 = arith.constant 1.000000e-01 : f32
    %104 = vector.broadcast %cst_31 : f32 to vector<8x128xf32>
    %105 = arith.subf %103, %104 : vector<8x128xf32>
    %c8 = arith.constant 8 : index
    %106 = arith.index_cast %3 : i32 to index
    %c0_32 = arith.constant 0 : index
    %107 = vector.load %arg1[%c8, %106, %c0_32] : memref<25x8x128xf32, #tpu.memory_space<vmem>>, vector<1x8x128xf32>
    %108 = vector.shape_cast %107 : vector<1x8x128xf32> to vector<8x128xf32>
    %cst_33 = arith.constant 1.000000e-01 : f32
    %109 = vector.broadcast %cst_33 : f32 to vector<8x128xf32>
    %110 = arith.subf %108, %109 : vector<8x128xf32>
    %111 = arith.maximumf %97, %33 : vector<8x128xf32>
    %112 = arith.addf %17, %105 : vector<8x128xf32>
    %113 = arith.maximumf %111, %112 : vector<8x128xf32>
    %114 = arith.maximumf %100, %36 : vector<8x128xf32>
    %115 = arith.addf %20, %110 : vector<8x128xf32>
    %116 = arith.maximumf %114, %115 : vector<8x128xf32>
    %c7 = arith.constant 7 : index
    %117 = arith.index_cast %3 : i32 to index
    %c0_34 = arith.constant 0 : index
    %118 = vector.load %arg1[%c7, %117, %c0_34] : memref<25x8x128xf32, #tpu.memory_space<vmem>>, vector<1x8x128xf32>
    %119 = vector.shape_cast %118 : vector<1x8x128xf32> to vector<8x128xf32>
    %cst_35 = arith.constant 1.000000e-01 : f32
    %120 = vector.broadcast %cst_35 : f32 to vector<8x128xf32>
    %121 = arith.subf %119, %120 : vector<8x128xf32>
    %c7_36 = arith.constant 7 : index
    %122 = arith.index_cast %3 : i32 to index
    %c0_37 = arith.constant 0 : index
    %123 = vector.load %arg1[%c7_36, %122, %c0_37] : memref<25x8x128xf32, #tpu.memory_space<vmem>>, vector<1x8x128xf32>
    %124 = vector.shape_cast %123 : vector<1x8x128xf32> to vector<8x128xf32>
    %cst_38 = arith.constant 1.000000e-01 : f32
    %125 = vector.broadcast %cst_38 : f32 to vector<8x128xf32>
    %126 = arith.subf %124, %125 : vector<8x128xf32>
    %127 = arith.maximumf %113, %49 : vector<8x128xf32>
    %128 = arith.addf %33, %121 : vector<8x128xf32>
    %129 = arith.maximumf %127, %128 : vector<8x128xf32>
    %130 = arith.maximumf %116, %52 : vector<8x128xf32>
    %131 = arith.addf %36, %126 : vector<8x128xf32>
    %132 = arith.maximumf %130, %131 : vector<8x128xf32>
    %c8_39 = arith.constant 8 : index
    %133 = arith.index_cast %3 : i32 to index
    %c0_40 = arith.constant 0 : index
    %134 = vector.load %arg1[%c8_39, %133, %c0_40] : memref<25x8x128xf32, #tpu.memory_space<vmem>>, vector<1x8x128xf32>
    %135 = vector.shape_cast %134 : vector<1x8x128xf32> to vector<8x128xf32>
    %cst_41 = arith.constant 1.000000e-01 : f32
    %136 = vector.broadcast %cst_41 : f32 to vector<8x128xf32>
    %137 = arith.subf %135, %136 : vector<8x128xf32>
    %c6_42 = arith.constant 6 : index
    %138 = arith.index_cast %3 : i32 to index
    %c0_43 = arith.constant 0 : index
    %139 = vector.load %arg1[%c6_42, %138, %c0_43] : memref<25x8x128xf32, #tpu.memory_space<vmem>>, vector<1x8x128xf32>
    %140 = vector.shape_cast %139 : vector<1x8x128xf32> to vector<8x128xf32>
    %cst_44 = arith.constant 1.000000e-01 : f32
    %141 = vector.broadcast %cst_44 : f32 to vector<8x128xf32>
    %142 = arith.subf %140, %141 : vector<8x128xf32>
    %143 = arith.maximumf %129, %65 : vector<8x128xf32>
    %144 = arith.addf %49, %137 : vector<8x128xf32>
    %145 = arith.maximumf %143, %144 : vector<8x128xf32>
    %146 = arith.maximumf %132, %68 : vector<8x128xf32>
    %147 = arith.addf %52, %142 : vector<8x128xf32>
    %148 = arith.maximumf %146, %147 : vector<8x128xf32>
    %c9_45 = arith.constant 9 : index
    %149 = arith.index_cast %3 : i32 to index
    %c0_46 = arith.constant 0 : index
    %150 = vector.load %arg1[%c9_45, %149, %c0_46] : memref<25x8x128xf32, #tpu.memory_space<vmem>>, vector<1x8x128xf32>
    %151 = vector.shape_cast %150 : vector<1x8x128xf32> to vector<8x128xf32>
    %cst_47 = arith.constant 1.000000e-01 : f32
    %152 = vector.broadcast %cst_47 : f32 to vector<8x128xf32>
    %153 = arith.subf %151, %152 : vector<8x128xf32>
    %c5_48 = arith.constant 5 : index
    %154 = arith.index_cast %3 : i32 to index
    %c0_49 = arith.constant 0 : index
    %155 = vector.load %arg1[%c5_48, %154, %c0_49] : memref<25x8x128xf32, #tpu.memory_space<vmem>>, vector<1x8x128xf32>
    %156 = vector.shape_cast %155 : vector<1x8x128xf32> to vector<8x128xf32>
    %cst_50 = arith.constant 1.000000e-01 : f32
    %157 = vector.broadcast %cst_50 : f32 to vector<8x128xf32>
    %158 = arith.subf %156, %157 : vector<8x128xf32>
    %159 = arith.maximumf %145, %81 : vector<8x128xf32>
    %160 = arith.addf %65, %153 : vector<8x128xf32>
    %161 = arith.maximumf %159, %160 : vector<8x128xf32>
    %162 = arith.maximumf %148, %84 : vector<8x128xf32>
    %163 = arith.addf %68, %158 : vector<8x128xf32>
    %164 = arith.maximumf %162, %163 : vector<8x128xf32>
    %c10 = arith.constant 10 : index
    %165 = arith.index_cast %3 : i32 to index
    %c0_51 = arith.constant 0 : index
    %166 = vector.load %arg1[%c10, %165, %c0_51] : memref<25x8x128xf32, #tpu.memory_space<vmem>>, vector<1x8x128xf32>
    %167 = vector.shape_cast %166 : vector<1x8x128xf32> to vector<8x128xf32>
    %cst_52 = arith.constant 1.000000e-01 : f32
    %168 = vector.broadcast %cst_52 : f32 to vector<8x128xf32>
    %169 = arith.subf %167, %168 : vector<8x128xf32>
    %c14 = arith.constant 14 : index
    %170 = arith.index_cast %3 : i32 to index
    %c0_53 = arith.constant 0 : index
    %171 = vector.load %arg1[%c14, %170, %c0_53] : memref<25x8x128xf32, #tpu.memory_space<vmem>>, vector<1x8x128xf32>
    %172 = vector.shape_cast %171 : vector<1x8x128xf32> to vector<8x128xf32>
    %cst_54 = arith.constant 1.000000e-01 : f32
    %173 = vector.broadcast %cst_54 : f32 to vector<8x128xf32>
    %174 = arith.subf %172, %173 : vector<8x128xf32>
    %175 = arith.maximumf %4, %97 : vector<8x128xf32>
    %176 = arith.addf %4, %169 : vector<8x128xf32>
    %177 = arith.maximumf %175, %176 : vector<8x128xf32>
    %178 = arith.maximumf %4, %100 : vector<8x128xf32>
    %179 = arith.addf %4, %174 : vector<8x128xf32>
    %180 = arith.maximumf %178, %179 : vector<8x128xf32>
    %c11 = arith.constant 11 : index
    %181 = arith.index_cast %3 : i32 to index
    %c0_55 = arith.constant 0 : index
    %182 = vector.load %arg1[%c11, %181, %c0_55] : memref<25x8x128xf32, #tpu.memory_space<vmem>>, vector<1x8x128xf32>
    %183 = vector.shape_cast %182 : vector<1x8x128xf32> to vector<8x128xf32>
    %cst_56 = arith.constant 1.000000e-01 : f32
    %184 = vector.broadcast %cst_56 : f32 to vector<8x128xf32>
    %185 = arith.subf %183, %184 : vector<8x128xf32>
    %c13 = arith.constant 13 : index
    %186 = arith.index_cast %3 : i32 to index
    %c0_57 = arith.constant 0 : index
    %187 = vector.load %arg1[%c13, %186, %c0_57] : memref<25x8x128xf32, #tpu.memory_space<vmem>>, vector<1x8x128xf32>
    %188 = vector.shape_cast %187 : vector<1x8x128xf32> to vector<8x128xf32>
    %cst_58 = arith.constant 1.000000e-01 : f32
    %189 = vector.broadcast %cst_58 : f32 to vector<8x128xf32>
    %190 = arith.subf %188, %189 : vector<8x128xf32>
    %191 = arith.maximumf %177, %113 : vector<8x128xf32>
    %192 = arith.addf %97, %185 : vector<8x128xf32>
    %193 = arith.maximumf %191, %192 : vector<8x128xf32>
    %194 = arith.maximumf %180, %116 : vector<8x128xf32>
    %195 = arith.addf %100, %190 : vector<8x128xf32>
    %196 = arith.maximumf %194, %195 : vector<8x128xf32>
    %c12 = arith.constant 12 : index
    %197 = arith.index_cast %3 : i32 to index
    %c0_59 = arith.constant 0 : index
    %198 = vector.load %arg1[%c12, %197, %c0_59] : memref<25x8x128xf32, #tpu.memory_space<vmem>>, vector<1x8x128xf32>
    %199 = vector.shape_cast %198 : vector<1x8x128xf32> to vector<8x128xf32>
    %cst_60 = arith.constant 1.000000e-01 : f32
    %200 = vector.broadcast %cst_60 : f32 to vector<8x128xf32>
    %201 = arith.subf %199, %200 : vector<8x128xf32>
    %c12_61 = arith.constant 12 : index
    %202 = arith.index_cast %3 : i32 to index
    %c0_62 = arith.constant 0 : index
    %203 = vector.load %arg1[%c12_61, %202, %c0_62] : memref<25x8x128xf32, #tpu.memory_space<vmem>>, vector<1x8x128xf32>
    %204 = vector.shape_cast %203 : vector<1x8x128xf32> to vector<8x128xf32>
    %cst_63 = arith.constant 1.000000e-01 : f32
    %205 = vector.broadcast %cst_63 : f32 to vector<8x128xf32>
    %206 = arith.subf %204, %205 : vector<8x128xf32>
    %207 = arith.maximumf %193, %129 : vector<8x128xf32>
    %208 = arith.addf %113, %201 : vector<8x128xf32>
    %209 = arith.maximumf %207, %208 : vector<8x128xf32>
    %210 = arith.maximumf %196, %132 : vector<8x128xf32>
    %211 = arith.addf %116, %206 : vector<8x128xf32>
    %212 = arith.maximumf %210, %211 : vector<8x128xf32>
    %c13_64 = arith.constant 13 : index
    %213 = arith.index_cast %3 : i32 to index
    %c0_65 = arith.constant 0 : index
    %214 = vector.load %arg1[%c13_64, %213, %c0_65] : memref<25x8x128xf32, #tpu.memory_space<vmem>>, vector<1x8x128xf32>
    %215 = vector.shape_cast %214 : vector<1x8x128xf32> to vector<8x128xf32>
    %cst_66 = arith.constant 1.000000e-01 : f32
    %216 = vector.broadcast %cst_66 : f32 to vector<8x128xf32>
    %217 = arith.subf %215, %216 : vector<8x128xf32>
    %c11_67 = arith.constant 11 : index
    %218 = arith.index_cast %3 : i32 to index
    %c0_68 = arith.constant 0 : index
    %219 = vector.load %arg1[%c11_67, %218, %c0_68] : memref<25x8x128xf32, #tpu.memory_space<vmem>>, vector<1x8x128xf32>
    %220 = vector.shape_cast %219 : vector<1x8x128xf32> to vector<8x128xf32>
    %cst_69 = arith.constant 1.000000e-01 : f32
    %221 = vector.broadcast %cst_69 : f32 to vector<8x128xf32>
    %222 = arith.subf %220, %221 : vector<8x128xf32>
    %223 = arith.maximumf %209, %145 : vector<8x128xf32>
    %224 = arith.addf %129, %217 : vector<8x128xf32>
    %225 = arith.maximumf %223, %224 : vector<8x128xf32>
    %226 = arith.maximumf %212, %148 : vector<8x128xf32>
    %227 = arith.addf %132, %222 : vector<8x128xf32>
    %228 = arith.maximumf %226, %227 : vector<8x128xf32>
    %c14_70 = arith.constant 14 : index
    %229 = arith.index_cast %3 : i32 to index
    %c0_71 = arith.constant 0 : index
    %230 = vector.load %arg1[%c14_70, %229, %c0_71] : memref<25x8x128xf32, #tpu.memory_space<vmem>>, vector<1x8x128xf32>
    %231 = vector.shape_cast %230 : vector<1x8x128xf32> to vector<8x128xf32>
    %cst_72 = arith.constant 1.000000e-01 : f32
    %232 = vector.broadcast %cst_72 : f32 to vector<8x128xf32>
    %233 = arith.subf %231, %232 : vector<8x128xf32>
    %c10_73 = arith.constant 10 : index
    %234 = arith.index_cast %3 : i32 to index
    %c0_74 = arith.constant 0 : index
    %235 = vector.load %arg1[%c10_73, %234, %c0_74] : memref<25x8x128xf32, #tpu.memory_space<vmem>>, vector<1x8x128xf32>
    %236 = vector.shape_cast %235 : vector<1x8x128xf32> to vector<8x128xf32>
    %cst_75 = arith.constant 1.000000e-01 : f32
    %237 = vector.broadcast %cst_75 : f32 to vector<8x128xf32>
    %238 = arith.subf %236, %237 : vector<8x128xf32>
    %239 = arith.maximumf %225, %161 : vector<8x128xf32>
    %240 = arith.addf %145, %233 : vector<8x128xf32>
    %241 = arith.maximumf %239, %240 : vector<8x128xf32>
    %242 = arith.maximumf %228, %164 : vector<8x128xf32>
    %243 = arith.addf %148, %238 : vector<8x128xf32>
    %244 = arith.maximumf %242, %243 : vector<8x128xf32>
    %c15 = arith.constant 15 : index
    %245 = arith.index_cast %3 : i32 to index
    %c0_76 = arith.constant 0 : index
    %246 = vector.load %arg1[%c15, %245, %c0_76] : memref<25x8x128xf32, #tpu.memory_space<vmem>>, vector<1x8x128xf32>
    %247 = vector.shape_cast %246 : vector<1x8x128xf32> to vector<8x128xf32>
    %cst_77 = arith.constant 1.000000e-01 : f32
    %248 = vector.broadcast %cst_77 : f32 to vector<8x128xf32>
    %249 = arith.subf %247, %248 : vector<8x128xf32>
    %c19 = arith.constant 19 : index
    %250 = arith.index_cast %3 : i32 to index
    %c0_78 = arith.constant 0 : index
    %251 = vector.load %arg1[%c19, %250, %c0_78] : memref<25x8x128xf32, #tpu.memory_space<vmem>>, vector<1x8x128xf32>
    %252 = vector.shape_cast %251 : vector<1x8x128xf32> to vector<8x128xf32>
    %cst_79 = arith.constant 1.000000e-01 : f32
    %253 = vector.broadcast %cst_79 : f32 to vector<8x128xf32>
    %254 = arith.subf %252, %253 : vector<8x128xf32>
    %255 = arith.maximumf %4, %177 : vector<8x128xf32>
    %256 = arith.addf %4, %249 : vector<8x128xf32>
    %257 = arith.maximumf %255, %256 : vector<8x128xf32>
    %258 = arith.maximumf %4, %180 : vector<8x128xf32>
    %259 = arith.addf %4, %254 : vector<8x128xf32>
    %260 = arith.maximumf %258, %259 : vector<8x128xf32>
    %c16 = arith.constant 16 : index
    %261 = arith.index_cast %3 : i32 to index
    %c0_80 = arith.constant 0 : index
    %262 = vector.load %arg1[%c16, %261, %c0_80] : memref<25x8x128xf32, #tpu.memory_space<vmem>>, vector<1x8x128xf32>
    %263 = vector.shape_cast %262 : vector<1x8x128xf32> to vector<8x128xf32>
    %cst_81 = arith.constant 1.000000e-01 : f32
    %264 = vector.broadcast %cst_81 : f32 to vector<8x128xf32>
    %265 = arith.subf %263, %264 : vector<8x128xf32>
    %c18 = arith.constant 18 : index
    %266 = arith.index_cast %3 : i32 to index
    %c0_82 = arith.constant 0 : index
    %267 = vector.load %arg1[%c18, %266, %c0_82] : memref<25x8x128xf32, #tpu.memory_space<vmem>>, vector<1x8x128xf32>
    %268 = vector.shape_cast %267 : vector<1x8x128xf32> to vector<8x128xf32>
    %cst_83 = arith.constant 1.000000e-01 : f32
    %269 = vector.broadcast %cst_83 : f32 to vector<8x128xf32>
    %270 = arith.subf %268, %269 : vector<8x128xf32>
    %271 = arith.maximumf %257, %193 : vector<8x128xf32>
    %272 = arith.addf %177, %265 : vector<8x128xf32>
    %273 = arith.maximumf %271, %272 : vector<8x128xf32>
    %274 = arith.maximumf %260, %196 : vector<8x128xf32>
    %275 = arith.addf %180, %270 : vector<8x128xf32>
    %276 = arith.maximumf %274, %275 : vector<8x128xf32>
    %c17 = arith.constant 17 : index
    %277 = arith.index_cast %3 : i32 to index
    %c0_84 = arith.constant 0 : index
    %278 = vector.load %arg1[%c17, %277, %c0_84] : memref<25x8x128xf32, #tpu.memory_space<vmem>>, vector<1x8x128xf32>
    %279 = vector.shape_cast %278 : vector<1x8x128xf32> to vector<8x128xf32>
    %cst_85 = arith.constant 1.000000e-01 : f32
    %280 = vector.broadcast %cst_85 : f32 to vector<8x128xf32>
    %281 = arith.subf %279, %280 : vector<8x128xf32>
    %c17_86 = arith.constant 17 : index
    %282 = arith.index_cast %3 : i32 to index
    %c0_87 = arith.constant 0 : index
    %283 = vector.load %arg1[%c17_86, %282, %c0_87] : memref<25x8x128xf32, #tpu.memory_space<vmem>>, vector<1x8x128xf32>
    %284 = vector.shape_cast %283 : vector<1x8x128xf32> to vector<8x128xf32>
    %cst_88 = arith.constant 1.000000e-01 : f32
    %285 = vector.broadcast %cst_88 : f32 to vector<8x128xf32>
    %286 = arith.subf %284, %285 : vector<8x128xf32>
    %287 = arith.maximumf %273, %209 : vector<8x128xf32>
    %288 = arith.addf %193, %281 : vector<8x128xf32>
    %289 = arith.maximumf %287, %288 : vector<8x128xf32>
    %290 = arith.maximumf %276, %212 : vector<8x128xf32>
    %291 = arith.addf %196, %286 : vector<8x128xf32>
    %292 = arith.maximumf %290, %291 : vector<8x128xf32>
    %c18_89 = arith.constant 18 : index
    %293 = arith.index_cast %3 : i32 to index
    %c0_90 = arith.constant 0 : index
    %294 = vector.load %arg1[%c18_89, %293, %c0_90] : memref<25x8x128xf32, #tpu.memory_space<vmem>>, vector<1x8x128xf32>
    %295 = vector.shape_cast %294 : vector<1x8x128xf32> to vector<8x128xf32>
    %cst_91 = arith.constant 1.000000e-01 : f32
    %296 = vector.broadcast %cst_91 : f32 to vector<8x128xf32>
    %297 = arith.subf %295, %296 : vector<8x128xf32>
    %c16_92 = arith.constant 16 : index
    %298 = arith.index_cast %3 : i32 to index
    %c0_93 = arith.constant 0 : index
    %299 = vector.load %arg1[%c16_92, %298, %c0_93] : memref<25x8x128xf32, #tpu.memory_space<vmem>>, vector<1x8x128xf32>
    %300 = vector.shape_cast %299 : vector<1x8x128xf32> to vector<8x128xf32>
    %cst_94 = arith.constant 1.000000e-01 : f32
    %301 = vector.broadcast %cst_94 : f32 to vector<8x128xf32>
    %302 = arith.subf %300, %301 : vector<8x128xf32>
    %303 = arith.maximumf %289, %225 : vector<8x128xf32>
    %304 = arith.addf %209, %297 : vector<8x128xf32>
    %305 = arith.maximumf %303, %304 : vector<8x128xf32>
    %306 = arith.maximumf %292, %228 : vector<8x128xf32>
    %307 = arith.addf %212, %302 : vector<8x128xf32>
    %308 = arith.maximumf %306, %307 : vector<8x128xf32>
    %c19_95 = arith.constant 19 : index
    %309 = arith.index_cast %3 : i32 to index
    %c0_96 = arith.constant 0 : index
    %310 = vector.load %arg1[%c19_95, %309, %c0_96] : memref<25x8x128xf32, #tpu.memory_space<vmem>>, vector<1x8x128xf32>
    %311 = vector.shape_cast %310 : vector<1x8x128xf32> to vector<8x128xf32>
    %cst_97 = arith.constant 1.000000e-01 : f32
    %312 = vector.broadcast %cst_97 : f32 to vector<8x128xf32>
    %313 = arith.subf %311, %312 : vector<8x128xf32>
    %c15_98 = arith.constant 15 : index
    %314 = arith.index_cast %3 : i32 to index
    %c0_99 = arith.constant 0 : index
    %315 = vector.load %arg1[%c15_98, %314, %c0_99] : memref<25x8x128xf32, #tpu.memory_space<vmem>>, vector<1x8x128xf32>
    %316 = vector.shape_cast %315 : vector<1x8x128xf32> to vector<8x128xf32>
    %cst_100 = arith.constant 1.000000e-01 : f32
    %317 = vector.broadcast %cst_100 : f32 to vector<8x128xf32>
    %318 = arith.subf %316, %317 : vector<8x128xf32>
    %319 = arith.maximumf %305, %241 : vector<8x128xf32>
    %320 = arith.addf %225, %313 : vector<8x128xf32>
    %321 = arith.maximumf %319, %320 : vector<8x128xf32>
    %322 = arith.maximumf %308, %244 : vector<8x128xf32>
    %323 = arith.addf %228, %318 : vector<8x128xf32>
    %324 = arith.maximumf %322, %323 : vector<8x128xf32>
    %c20 = arith.constant 20 : index
    %325 = arith.index_cast %3 : i32 to index
    %c0_101 = arith.constant 0 : index
    %326 = vector.load %arg1[%c20, %325, %c0_101] : memref<25x8x128xf32, #tpu.memory_space<vmem>>, vector<1x8x128xf32>
    %327 = vector.shape_cast %326 : vector<1x8x128xf32> to vector<8x128xf32>
    %cst_102 = arith.constant 1.000000e-01 : f32
    %328 = vector.broadcast %cst_102 : f32 to vector<8x128xf32>
    %329 = arith.subf %327, %328 : vector<8x128xf32>
    %c24 = arith.constant 24 : index
    %330 = arith.index_cast %3 : i32 to index
    %c0_103 = arith.constant 0 : index
    %331 = vector.load %arg1[%c24, %330, %c0_103] : memref<25x8x128xf32, #tpu.memory_space<vmem>>, vector<1x8x128xf32>
    %332 = vector.shape_cast %331 : vector<1x8x128xf32> to vector<8x128xf32>
    %cst_104 = arith.constant 1.000000e-01 : f32
    %333 = vector.broadcast %cst_104 : f32 to vector<8x128xf32>
    %334 = arith.subf %332, %333 : vector<8x128xf32>
    %335 = arith.maximumf %4, %257 : vector<8x128xf32>
    %336 = arith.addf %4, %329 : vector<8x128xf32>
    %337 = arith.maximumf %335, %336 : vector<8x128xf32>
    %338 = arith.maximumf %4, %260 : vector<8x128xf32>
    %339 = arith.addf %4, %334 : vector<8x128xf32>
    %340 = arith.maximumf %338, %339 : vector<8x128xf32>
    %c21 = arith.constant 21 : index
    %341 = arith.index_cast %3 : i32 to index
    %c0_105 = arith.constant 0 : index
    %342 = vector.load %arg1[%c21, %341, %c0_105] : memref<25x8x128xf32, #tpu.memory_space<vmem>>, vector<1x8x128xf32>
    %343 = vector.shape_cast %342 : vector<1x8x128xf32> to vector<8x128xf32>
    %cst_106 = arith.constant 1.000000e-01 : f32
    %344 = vector.broadcast %cst_106 : f32 to vector<8x128xf32>
    %345 = arith.subf %343, %344 : vector<8x128xf32>
    %c23 = arith.constant 23 : index
    %346 = arith.index_cast %3 : i32 to index
    %c0_107 = arith.constant 0 : index
    %347 = vector.load %arg1[%c23, %346, %c0_107] : memref<25x8x128xf32, #tpu.memory_space<vmem>>, vector<1x8x128xf32>
    %348 = vector.shape_cast %347 : vector<1x8x128xf32> to vector<8x128xf32>
    %cst_108 = arith.constant 1.000000e-01 : f32
    %349 = vector.broadcast %cst_108 : f32 to vector<8x128xf32>
    %350 = arith.subf %348, %349 : vector<8x128xf32>
    %351 = arith.maximumf %337, %273 : vector<8x128xf32>
    %352 = arith.addf %257, %345 : vector<8x128xf32>
    %353 = arith.maximumf %351, %352 : vector<8x128xf32>
    %354 = arith.maximumf %340, %276 : vector<8x128xf32>
    %355 = arith.addf %260, %350 : vector<8x128xf32>
    %356 = arith.maximumf %354, %355 : vector<8x128xf32>
    %c22 = arith.constant 22 : index
    %357 = arith.index_cast %3 : i32 to index
    %c0_109 = arith.constant 0 : index
    %358 = vector.load %arg1[%c22, %357, %c0_109] : memref<25x8x128xf32, #tpu.memory_space<vmem>>, vector<1x8x128xf32>
    %359 = vector.shape_cast %358 : vector<1x8x128xf32> to vector<8x128xf32>
    %cst_110 = arith.constant 1.000000e-01 : f32
    %360 = vector.broadcast %cst_110 : f32 to vector<8x128xf32>
    %361 = arith.subf %359, %360 : vector<8x128xf32>
    %c22_111 = arith.constant 22 : index
    %362 = arith.index_cast %3 : i32 to index
    %c0_112 = arith.constant 0 : index
    %363 = vector.load %arg1[%c22_111, %362, %c0_112] : memref<25x8x128xf32, #tpu.memory_space<vmem>>, vector<1x8x128xf32>
    %364 = vector.shape_cast %363 : vector<1x8x128xf32> to vector<8x128xf32>
    %cst_113 = arith.constant 1.000000e-01 : f32
    %365 = vector.broadcast %cst_113 : f32 to vector<8x128xf32>
    %366 = arith.subf %364, %365 : vector<8x128xf32>
    %367 = arith.maximumf %353, %289 : vector<8x128xf32>
    %368 = arith.addf %273, %361 : vector<8x128xf32>
    %369 = arith.maximumf %367, %368 : vector<8x128xf32>
    %370 = arith.maximumf %356, %292 : vector<8x128xf32>
    %371 = arith.addf %276, %366 : vector<8x128xf32>
    %372 = arith.maximumf %370, %371 : vector<8x128xf32>
    %c23_114 = arith.constant 23 : index
    %373 = arith.index_cast %3 : i32 to index
    %c0_115 = arith.constant 0 : index
    %374 = vector.load %arg1[%c23_114, %373, %c0_115] : memref<25x8x128xf32, #tpu.memory_space<vmem>>, vector<1x8x128xf32>
    %375 = vector.shape_cast %374 : vector<1x8x128xf32> to vector<8x128xf32>
    %cst_116 = arith.constant 1.000000e-01 : f32
    %376 = vector.broadcast %cst_116 : f32 to vector<8x128xf32>
    %377 = arith.subf %375, %376 : vector<8x128xf32>
    %c21_117 = arith.constant 21 : index
    %378 = arith.index_cast %3 : i32 to index
    %c0_118 = arith.constant 0 : index
    %379 = vector.load %arg1[%c21_117, %378, %c0_118] : memref<25x8x128xf32, #tpu.memory_space<vmem>>, vector<1x8x128xf32>
    %380 = vector.shape_cast %379 : vector<1x8x128xf32> to vector<8x128xf32>
    %cst_119 = arith.constant 1.000000e-01 : f32
    %381 = vector.broadcast %cst_119 : f32 to vector<8x128xf32>
    %382 = arith.subf %380, %381 : vector<8x128xf32>
    %383 = arith.maximumf %369, %305 : vector<8x128xf32>
    %384 = arith.addf %289, %377 : vector<8x128xf32>
    %385 = arith.maximumf %383, %384 : vector<8x128xf32>
    %386 = arith.maximumf %372, %308 : vector<8x128xf32>
    %387 = arith.addf %292, %382 : vector<8x128xf32>
    %388 = arith.maximumf %386, %387 : vector<8x128xf32>
    %c24_120 = arith.constant 24 : index
    %389 = arith.index_cast %3 : i32 to index
    %c0_121 = arith.constant 0 : index
    %390 = vector.load %arg1[%c24_120, %389, %c0_121] : memref<25x8x128xf32, #tpu.memory_space<vmem>>, vector<1x8x128xf32>
    %391 = vector.shape_cast %390 : vector<1x8x128xf32> to vector<8x128xf32>
    %cst_122 = arith.constant 1.000000e-01 : f32
    %392 = vector.broadcast %cst_122 : f32 to vector<8x128xf32>
    %393 = arith.subf %391, %392 : vector<8x128xf32>
    %c20_123 = arith.constant 20 : index
    %394 = arith.index_cast %3 : i32 to index
    %c0_124 = arith.constant 0 : index
    %395 = vector.load %arg1[%c20_123, %394, %c0_124] : memref<25x8x128xf32, #tpu.memory_space<vmem>>, vector<1x8x128xf32>
    %396 = vector.shape_cast %395 : vector<1x8x128xf32> to vector<8x128xf32>
    %cst_125 = arith.constant 1.000000e-01 : f32
    %397 = vector.broadcast %cst_125 : f32 to vector<8x128xf32>
    %398 = arith.subf %396, %397 : vector<8x128xf32>
    %399 = arith.maximumf %385, %321 : vector<8x128xf32>
    %400 = arith.addf %305, %393 : vector<8x128xf32>
    %401 = arith.maximumf %399, %400 : vector<8x128xf32>
    %402 = arith.maximumf %388, %324 : vector<8x128xf32>
    %403 = arith.addf %308, %398 : vector<8x128xf32>
    %404 = arith.maximumf %402, %403 : vector<8x128xf32>
    %c0_126 = arith.constant 0 : index
    %405 = arith.index_cast %3 : i32 to index
    %c0_127 = arith.constant 0 : index
    %406 = vector.load %arg2[%c0_126, %405, %c0_127] : memref<2x8x128xf32, #tpu.memory_space<vmem>>, vector<1x8x128xf32>
    %407 = vector.shape_cast %406 : vector<1x8x128xf32> to vector<8x128xf32>
    %408 = vector.shape_cast %401 : vector<8x128xf32> to vector<1x8x128xf32>
    tpu.vector_store %arg2[%c0_126, %405, %c0_127], %408 {strides = array<i32>} : memref<2x8x128xf32, #tpu.memory_space<vmem>>, vector<1x8x128xf32>,
    %c1_128 = arith.constant 1 : index
    %409 = arith.index_cast %3 : i32 to index
    %c0_129 = arith.constant 0 : index
    %410 = vector.load %arg2[%c1_128, %409, %c0_129] : memref<2x8x128xf32, #tpu.memory_space<vmem>>, vector<1x8x128xf32>
    %411 = vector.shape_cast %410 : vector<1x8x128xf32> to vector<8x128xf32>
    %412 = vector.shape_cast %404 : vector<8x128xf32> to vector<1x8x128xf32>
    tpu.vector_store %arg2[%c1_128, %409, %c0_129], %412 {strides = array<i32>} : memref<2x8x128xf32, #tpu.memory_space<vmem>>, vector<1x8x128xf32>,
    %c1_i32_130 = arith.constant 1 : i32
    return
  }
  func.func @transform_0(%arg0: i32) -> (i32, i32, i32) {
    %c0_i32 = arith.constant 0 : i32
    %c0_i32_0 = arith.constant 0 : i32
    %c0_i32_1 = arith.constant 0 : i32
    return %c0_i32, %arg0, %c0_i32_0 : i32, i32, i32
  }
  func.func @transform_1(%arg0: i32) -> (i32, i32, i32) {
    %c0_i32 = arith.constant 0 : i32
    %c0_i32_0 = arith.constant 0 : i32
    %c0_i32_1 = arith.constant 0 : i32
    return %c0_i32, %arg0, %c0_i32_0 : i32, i32, i32
  }
}

</mosaic_0001>

<llo_original>
// kernel: wunsch_line_matcher.2
$region0: #{wunsch_line_matcher.2}
  #allocation0 [shape = 'u32[]', space=smem, size = 0x4, offset = 0x4, fixed_abs, tag = 'smem constant byte address 0x4 - core index']
  #allocation1 [shape = 'u32[144,128]{1,0:T(1,128)}', space=vmem, size = 0x12000, scoped, tag = 'internal scratch']
  %s0 = inlined_call_operand.vmem [shape: bf16[80,32], index: 0, kind: input, shape index: {}]
  %s1 = inlined_call_operand.vmem [shape: bf16[32,640], index: 1, kind: input, shape index: {}]
  %s2 = inlined_call_operand.vmem [shape: f32[80,1], index: 2, kind: input, shape index: {}]
  %s3 = inlined_call_operand.vmem [shape: f32[1,640], index: 3, kind: input, shape index: {}]
  %s4 = inlined_call_operand.vmem [shape: bf16[80,640], index: 4, kind: output, shape index: {}]
  %s5 = sld [smem:[#allocation0]]
  $region26: #{wunsch_line_matcher.2} parent=0
    _
  %s7 = ssub.s32 1, %s5
  %s8 = scalar_select 0, %s7, %s5
  // Predicated region
  $region2: #{wunsch_line_matcher.2} parent=0 // pred_check
    _
  $region3: #{wunsch_line_matcher.2} parent=0 // pred_check_branch
    %10 = sbr.rel (0) target = $region5
  $region4: #{wunsch_line_matcher.2} parent=0 // pred_region
    _
  $region5: #{wunsch_line_matcher.2} parent=0 // pred_fallthru
    _
  // Predicated region
  $region6: #{wunsch_line_matcher.2} parent=0 // pred_check
    _
  $region7: #{wunsch_line_matcher.2} parent=0 // pred_check_branch
    %12 = sbr.rel (0) target = $region9
  $region8: #{wunsch_line_matcher.2} parent=0 // pred_region
    _
  $region9: #{wunsch_line_matcher.2} parent=0 // pred_fallthru
    _
  // Predicated region
  $region10: #{wunsch_line_matcher.2} parent=0 // pred_check
    _
  $region11: #{wunsch_line_matcher.2} parent=0 // pred_check_branch
    %14 = sbr.rel (0) target = $region13
  $region12: #{wunsch_line_matcher.2} parent=0 // pred_region
    _
  $region13: #{wunsch_line_matcher.2} parent=0 // pred_fallthru
    _
  // Predicated region
  $region14: #{wunsch_line_matcher.2} parent=0 // pred_check
    _
  $region15: #{wunsch_line_matcher.2} parent=0 // pred_check_branch
    %16 = sbr.rel (0) target = $region17
  $region16: #{wunsch_line_matcher.2} parent=0 // pred_region
    _
  $region17: #{wunsch_line_matcher.2} parent=0 // pred_fallthru
    _
  %v18 = vld [vmem:[%s0] sm:$0xf]
  %v19 = vld [vmem:[%s0 + $0x4] sm:$0xf]
  %v20 = vld [vmem:[%s0 + $0x8] sm:$0xf]
  %v21 = vld [vmem:[%s0 + $0xc] sm:$0xf]
  %v22 = vld [vmem:[%s0 + $0x10] sm:$0xf]
  %v23 = vld [vmem:[%s0 + $0x14] sm:$0xf]
  %v24 = vld [vmem:[%s0 + $0x18] sm:$0xf]
  %v25 = vld [vmem:[%s0 + $0x1c] sm:$0xf]
  %v26 = vld [vmem:[%s0 + $0x20] sm:$0xf]
  %v27 = vld [vmem:[%s0 + $0x24] sm:$0xf]
  %v28 = vld [vmem:[%s1] sm:$0xff]
  %v29 = vld [vmem:[%s1 + $0x8] sm:$0xff]
  %v30 = vld [vmem:[%s1 + $0x10] sm:$0xf]
  %v31 = vld [vmem:[%s1 + $0x14] sm:$0xff]
  %v32 = vld [vmem:[%s1 + $0x1c] sm:$0xff]
  %v33 = vld [vmem:[%s1 + $0x24] sm:$0xf]
  %v34 = vld [vmem:[%s1 + $0x28] sm:$0xff]
  %v35 = vld [vmem:[%s1 + $0x30] sm:$0xff]
  %v36 = vld [vmem:[%s1 + $0x38] sm:$0xf]
  %v37 = vld [vmem:[%s1 + $0x3c] sm:$0xff]
  %v38 = vld [vmem:[%s1 + $0x44] sm:$0xff]
  %v39 = vld [vmem:[%s1 + $0x4c] sm:$0xf]
  %v50 = vunpack.c.l.b16 %v18
  %v51 = vunpack.c.l.b16 %v19
  %v52 = vunpack.c.l.b16 %v20
  %v53 = vunpack.c.l.b16 %v21
  %v54 = vunpack.c.l.b16 %v22
  %v55 = vunpack.c.l.b16 %v23
  %v56 = vunpack.c.l.b16 %v24
  %v57 = vunpack.c.l.b16 %v25
  %v58 = vunpack.c.l.b16 %v26
  %v59 = vunpack.c.l.b16 %v27
  %v60 = vpack.c.b16 %v51, %v50
  %v61 = vpack.c.b16 %v53, %v52
  %v62 = vpack.c.b16 %v55, %v54
  %v63 = vpack.c.b16 %v57, %v56
  %v64 = vpack.c.b16 %v59, %v58
  %v77 = vunpack.c.l.b16 %v28
  %v78 = vunpack.c.h.b16 %v28
  %v79 = vunpack.c.l.b16 %v29
  %v80 = vunpack.c.h.b16 %v29
  %v81 = vunpack.c.l.b16 %v30
  %v82 = vunpack.c.l.b16 %v31
  %v83 = vunpack.c.h.b16 %v31
  %v84 = vunpack.c.l.b16 %v32
  %v85 = vunpack.c.h.b16 %v32
  %v86 = vunpack.c.l.b16 %v33
  %v87 = vunpack.c.l.b16 %v34
  %v88 = vunpack.c.h.b16 %v34
  %v89 = vunpack.c.l.b16 %v35
  %v90 = vunpack.c.h.b16 %v35
  %v91 = vunpack.c.l.b16 %v36
  %v92 = vunpack.c.l.b16 %v37
  %v93 = vunpack.c.h.b16 %v37
  %v94 = vunpack.c.l.b16 %v38
  %v95 = vunpack.c.h.b16 %v38
  %v96 = vunpack.c.l.b16 %v39
  %v97 = vpack.c.b16 %v82, %v77
  %v98 = vpack.c.b16 %v83, %v78
  %v99 = vpack.c.b16 %v84, %v79
  %v100 = vpack.c.b16 %v85, %v80
  %v101 = vpack.c.b16 %v86, %v81
  %v102 = vpack.c.b16 %v92, %v87
  %v103 = vpack.c.b16 %v93, %v88
  %v104 = vpack.c.b16 %v94, %v89
  %v105 = vpack.c.b16 %v95, %v90
  %v106 = vpack.c.b16 %v96, %v91
  %vm117 = vcmask 261120
  %v119 = vsel %vm117, %v60, 0
  %v122 = vsel %vm117, %v61, 0
  %v125 = vsel %vm117, %v62, 0
  %v128 = vsel %vm117, %v63, 0
  %v131 = vsel %vm117, %v64, 0
  %133 = vmatprep.subr.bf16.mxu0 %v98
  %134 = vmatpush1.bf16.msra.mxu0 %v97
  %135 = vmatprep.subr.bf16.mxu0 %v103
  %136 = vmatpush1.bf16.msra.mxu0 %v102
  %137 = vmatprep.subr.bf16.mxu0 0
  %138 = vmatpush1.bf16.msra.mxu0 0
  %139 = vmatprep.subr.bf16.mxu0 0
  %140 = vmatpush1.bf16.msra.mxu0 0
  %141 = vmatprep.subr.bf16.mxu0 0
  %142 = vmatpush1.bf16.msra.mxu0 0
  %143 = vmatprep.subr.bf16.mxu0 0
  %144 = vmatpush1.bf16.msra.mxu0 0
  %145 = vmatprep.subr.bf16.mxu0 0
  %146 = vmatpush1.bf16.msra.mxu0 0
  %147 = vmatprep.subr.bf16.mxu0 0
  %148 = vmatpush1.bf16.msra.mxu0 0
  %149 = vmatprep.subr.bf16.mxu0 0
  %150 = vmatpush1.bf16.msra.mxu0 0
  %151 = vmatprep.subr.bf16.mxu0 0
  %152 = vmatpush1.bf16.msra.mxu0 0
  %153 = vmatprep.subr.bf16.mxu0 0
  %154 = vmatpush1.bf16.msra.mxu0 0
  %155 = vmatprep.subr.bf16.mxu0 0
  %156 = vmatpush1.bf16.msra.mxu0 0
  %157 = vmatprep.subr.bf16.mxu0 0
  %158 = vmatpush1.bf16.msra.mxu0 0
  %159 = vmatprep.subr.bf16.mxu0 0
  %160 = vmatpush1.bf16.msra.mxu0 0
  %161 = vmatprep.subr.bf16.mxu0 0
  %162 = vmatpush1.bf16.msra.mxu0 0
  %163 = vmatprep.subr.bf16.mxu0 0
  %164 = vmatpush1.bf16.msra.mxu0 0
  %165 = vmatprep.mubr.bf16.mxu0 0
  %166 = vmatmul.mubr.bf16.gmra.mrb[0].mxu0 %v119
  %v167 = vpop.f32.mrb[0].mxu0
  %v168 = vadd.f32 0.0, %v167
  %v169 = vpop.f32.mrb[0].mxu0
  %v170 = vadd.f32 0.0, %v169
  %v171 = vpop.f32.mrb[0].mxu0
  %v172 = vadd.f32 0.0, %v171
  %v173 = vpop.f32.mrb[0].mxu0
  %v174 = vadd.f32 0.0, %v173
  %175 = vmatprep.mubr.bf16.mxu0 0
  %176 = vmatmul.mubr.bf16.gmra.mrb[0].mxu0 %v122
  %v177 = vpop.f32.mrb[0].mxu0
  %v178 = vadd.f32 0.0, %v177
  %v179 = vpop.f32.mrb[0].mxu0
  %v180 = vadd.f32 0.0, %v179
  %v181 = vpop.f32.mrb[0].mxu0
  %v182 = vadd.f32 0.0, %v181
  %v183 = vpop.f32.mrb[0].mxu0
  %v184 = vadd.f32 0.0, %v183
  %185 = vmatprep.mubr.bf16.mxu0 0
  %186 = vmatmul.mubr.bf16.gmra.mrb[0].mxu0 %v125
  %v187 = vpop.f32.mrb[0].mxu0
  %v188 = vadd.f32 0.0, %v187
  %v189 = vpop.f32.mrb[0].mxu0
  %v190 = vadd.f32 0.0, %v189
  %v191 = vpop.f32.mrb[0].mxu0
  %v192 = vadd.f32 0.0, %v191
  %v193 = vpop.f32.mrb[0].mxu0
  %v194 = vadd.f32 0.0, %v193
  %195 = vmatprep.mubr.bf16.mxu0 0
  %196 = vmatmul.mubr.bf16.gmra.mrb[0].mxu0 %v128
  %v197 = vpop.f32.mrb[0].mxu0
  %v198 = vadd.f32 0.0, %v197
  %v199 = vpop.f32.mrb[0].mxu0
  %v200 = vadd.f32 0.0, %v199
  %v201 = vpop.f32.mrb[0].mxu0
  %v202 = vadd.f32 0.0, %v201
  %v203 = vpop.f32.mrb[0].mxu0
  %v204 = vadd.f32 0.0, %v203
  %205 = vmatprep.mubr.bf16.mxu0 0
  %206 = vmatmul.mubr.bf16.gmra.mrb[0].mxu0 %v131
  %v207 = vpop.f32.mrb[0].mxu0
  %v208 = vadd.f32 0.0, %v207
  %v209 = vpop.f32.mrb[0].mxu0
  %v210 = vadd.f32 0.0, %v209
  %v211 = vpop.f32.mrb[0].mxu0
  %v212 = vadd.f32 0.0, %v211
  %v213 = vpop.f32.mrb[0].mxu0
  %v214 = vadd.f32 0.0, %v213
  %215 = vdwg.mxu0
  %216 = vmatprep.subr.bf16.mxu0 %v100
  %217 = vmatpush1.bf16.msra.mxu0 %v99
  %218 = vmatprep.subr.bf16.mxu0 %v105
  %219 = vmatpush1.bf16.msra.mxu0 %v104
  %220 = vmatprep.subr.bf16.mxu0 0
  %221 = vmatpush1.bf16.msra.mxu0 0
  %222 = vmatprep.subr.bf16.mxu0 0
  %223 = vmatpush1.bf16.msra.mxu0 0
  %224 = vmatprep.subr.bf16.mxu0 0
  %225 = vmatpush1.bf16.msra.mxu0 0
  %226 = vmatprep.subr.bf16.mxu0 0
  %227 = vmatpush1.bf16.msra.mxu0 0
  %228 = vmatprep.subr.bf16.mxu0 0
  %229 = vmatpush1.bf16.msra.mxu0 0
  %230 = vmatprep.subr.bf16.mxu0 0
  %231 = vmatpush1.bf16.msra.mxu0 0
  %232 = vmatprep.subr.bf16.mxu0 0
  %233 = vmatpush1.bf16.msra.mxu0 0
  %234 = vmatprep.subr.bf16.mxu0 0
  %235 = vmatpush1.bf16.msra.mxu0 0
  %236 = vmatprep.subr.bf16.mxu0 0
  %237 = vmatpush1.bf16.msra.mxu0 0
  %238 = vmatprep.subr.bf16.mxu0 0
  %239 = vmatpush1.bf16.msra.mxu0 0
  %240 = vmatprep.subr.bf16.mxu0 0
  %241 = vmatpush1.bf16.msra.mxu0 0
  %242 = vmatprep.subr.bf16.mxu0 0
  %243 = vmatpush1.bf16.msra.mxu0 0
  %244 = vmatprep.subr.bf16.mxu0 0
  %245 = vmatpush1.bf16.msra.mxu0 0
  %246 = vmatprep.subr.bf16.mxu0 0
  %247 = vmatpush1.bf16.msra.mxu0 0
  %248 = vmatprep.mubr.bf16.mxu0 0
  %249 = vmatmul.mubr.bf16.gmra.mrb[0].mxu0 %v119
  %v250 = vpop.f32.mrb[0].mxu0
  %v251 = vadd.f32 0.0, %v250
  %v252 = vpop.f32.mrb[0].mxu0
  %v253 = vadd.f32 0.0, %v252
  %v254 = vpop.f32.mrb[0].mxu0
  %v255 = vadd.f32 0.0, %v254
  %v256 = vpop.f32.mrb[0].mxu0
  %v257 = vadd.f32 0.0, %v256
  %258 = vmatprep.mubr.bf16.mxu0 0
  %259 = vmatmul.mubr.bf16.gmra.mrb[0].mxu0 %v122
  %v260 = vpop.f32.mrb[0].mxu0
  %v261 = vadd.f32 0.0, %v260
  %v262 = vpop.f32.mrb[0].mxu0
  %v263 = vadd.f32 0.0, %v262
  %v264 = vpop.f32.mrb[0].mxu0
  %v265 = vadd.f32 0.0, %v264
  %v266 = vpop.f32.mrb[0].mxu0
  %v267 = vadd.f32 0.0, %v266
  %268 = vmatprep.mubr.bf16.mxu0 0
  %269 = vmatmul.mubr.bf16.gmra.mrb[0].mxu0 %v125
  %v270 = vpop.f32.mrb[0].mxu0
  %v271 = vadd.f32 0.0, %v270
  %v272 = vpop.f32.mrb[0].mxu0
  %v273 = vadd.f32 0.0, %v272
  %v274 = vpop.f32.mrb[0].mxu0
  %v275 = vadd.f32 0.0, %v274
  %v276 = vpop.f32.mrb[0].mxu0
  %v277 = vadd.f32 0.0, %v276
  %278 = vmatprep.mubr.bf16.mxu0 0
  %279 = vmatmul.mubr.bf16.gmra.mrb[0].mxu0 %v128
  %v280 = vpop.f32.mrb[0].mxu0
  %v281 = vadd.f32 0.0, %v280
  %v282 = vpop.f32.mrb[0].mxu0
  %v283 = vadd.f32 0.0, %v282
  %v284 = vpop.f32.mrb[0].mxu0
  %v285 = vadd.f32 0.0, %v284
  %v286 = vpop.f32.mrb[0].mxu0
  %v287 = vadd.f32 0.0, %v286
  %288 = vmatprep.mubr.bf16.mxu0 0
  %289 = vmatmul.mubr.bf16.gmra.mrb[0].mxu0 %v131
  %v290 = vpop.f32.mrb[0].mxu0
  %v291 = vadd.f32 0.0, %v290
  %v292 = vpop.f32.mrb[0].mxu0
  %v293 = vadd.f32 0.0, %v292
  %v294 = vpop.f32.mrb[0].mxu0
  %v295 = vadd.f32 0.0, %v294
  %v296 = vpop.f32.mrb[0].mxu0
  %v297 = vadd.f32 0.0, %v296
  %298 = vdwg.mxu0
  %299 = vmatprep.subr.bf16.mxu0 0
  %300 = vmatpush1.bf16.msra.mxu0 %v101
  %301 = vmatprep.subr.bf16.mxu0 0
  %302 = vmatpush1.bf16.msra.mxu0 %v106
  %303 = vmatprep.subr.bf16.mxu0 0
  %304 = vmatpush1.bf16.msra.mxu0 0
  %305 = vmatprep.subr.bf16.mxu0 0
  %306 = vmatpush1.bf16.msra.mxu0 0
  %307 = vmatprep.subr.bf16.mxu0 0
  %308 = vmatpush1.bf16.msra.mxu0 0
  %309 = vmatprep.subr.bf16.mxu0 0
  %310 = vmatpush1.bf16.msra.mxu0 0
  %311 = vmatprep.subr.bf16.mxu0 0
  %312 = vmatpush1.bf16.msra.mxu0 0
  %313 = vmatprep.subr.bf16.mxu0 0
  %314 = vmatpush1.bf16.msra.mxu0 0
  %315 = vmatprep.subr.bf16.mxu0 0
  %316 = vmatpush1.bf16.msra.mxu0 0
  %317 = vmatprep.subr.bf16.mxu0 0
  %318 = vmatpush1.bf16.msra.mxu0 0
  %319 = vmatprep.subr.bf16.mxu0 0
  %320 = vmatpush1.bf16.msra.mxu0 0
  %321 = vmatprep.subr.bf16.mxu0 0
  %322 = vmatpush1.bf16.msra.mxu0 0
  %323 = vmatprep.subr.bf16.mxu0 0
  %324 = vmatpush1.bf16.msra.mxu0 0
  %325 = vmatprep.subr.bf16.mxu0 0
  %326 = vmatpush1.bf16.msra.mxu0 0
  %327 = vmatprep.subr.bf16.mxu0 0
  %328 = vmatpush1.bf16.msra.mxu0 0
  %329 = vmatprep.subr.bf16.mxu0 0
  %330 = vmatpush1.bf16.msra.mxu0 0
  %331 = vmatprep.mubr.bf16.mxu0 0
  %332 = vmatmul.mubr.bf16.gmra.mrb[0].mxu0 %v119
  %v333 = vpop.f32.mrb[0].mxu0
  %v334 = vadd.f32 0.0, %v333
  %v335 = vpop.f32.mrb[0].mxu0
  %v336 = vpop.f32.mrb[0].mxu0
  %v337 = vadd.f32 0.0, %v336
  %v338 = vpop.f32.mrb[0].mxu0
  %339 = vmatprep.mubr.bf16.mxu0 0
  %340 = vmatmul.mubr.bf16.gmra.mrb[0].mxu0 %v122
  %v341 = vpop.f32.mrb[0].mxu0
  %v342 = vadd.f32 0.0, %v341
  %v343 = vpop.f32.mrb[0].mxu0
  %v344 = vpop.f32.mrb[0].mxu0
  %v345 = vadd.f32 0.0, %v344
  %v346 = vpop.f32.mrb[0].mxu0
  %347 = vmatprep.mubr.bf16.mxu0 0
  %348 = vmatmul.mubr.bf16.gmra.mrb[0].mxu0 %v125
  %v349 = vpop.f32.mrb[0].mxu0
  %v350 = vadd.f32 0.0, %v349
  %v351 = vpop.f32.mrb[0].mxu0
  %v352 = vpop.f32.mrb[0].mxu0
  %v353 = vadd.f32 0.0, %v352
  %v354 = vpop.f32.mrb[0].mxu0
  %355 = vmatprep.mubr.bf16.mxu0 0
  %356 = vmatmul.mubr.bf16.gmra.mrb[0].mxu0 %v128
  %v357 = vpop.f32.mrb[0].mxu0
  %v358 = vadd.f32 0.0, %v357
  %v359 = vpop.f32.mrb[0].mxu0
  %v360 = vpop.f32.mrb[0].mxu0
  %v361 = vadd.f32 0.0, %v360
  %v362 = vpop.f32.mrb[0].mxu0
  %363 = vmatprep.mubr.bf16.mxu0 0
  %364 = vmatmul.mubr.bf16.gmra.mrb[0].mxu0 %v131
  %v365 = vpop.f32.mrb[0].mxu0
  %v366 = vadd.f32 0.0, %v365
  %v367 = vpop.f32.mrb[0].mxu0
  %v368 = vpop.f32.mrb[0].mxu0
  %v369 = vadd.f32 0.0, %v368
  %v370 = vpop.f32.mrb[0].mxu0
  %371 = vdwg.mxu0
  %v372 = vld [vmem:[%s2] sm:$0xff]
  %v373 = vld [vmem:[%s2 + $0x8] sm:$0xff]
  %v374 = vld [vmem:[%s2 + $0x10] sm:$0xff]
  %v375 = vld [vmem:[%s2 + $0x18] sm:$0xff]
  %v376 = vld [vmem:[%s2 + $0x20] sm:$0xff]
  %v377 = vld [vmem:[%s2 + $0x28] sm:$0xff]
  %v378 = vld [vmem:[%s2 + $0x30] sm:$0xff]
  %v379 = vld [vmem:[%s2 + $0x38] sm:$0xff]
  %v380 = vld [vmem:[%s2 + $0x40] sm:$0xff]
  %v381 = vld [vmem:[%s2 + $0x48] sm:$0xff]
  %vm382 = vcmp.gt.f32.partialorder %v372, 0.5
  %vm383 = vcmp.gt.f32.partialorder %v373, 0.5
  %vm384 = vcmp.gt.f32.partialorder %v374, 0.5
  %vm385 = vcmp.gt.f32.partialorder %v375, 0.5
  %vm386 = vcmp.gt.f32.partialorder %v376, 0.5
  %vm387 = vcmp.gt.f32.partialorder %v377, 0.5
  %vm388 = vcmp.gt.f32.partialorder %v378, 0.5
  %vm389 = vcmp.gt.f32.partialorder %v379, 0.5
  %vm390 = vcmp.gt.f32.partialorder %v380, 0.5
  %vm391 = vcmp.gt.f32.partialorder %v381, 0.5
  %v392 = vld [vmem:[%s3] sm:$0x1f]
  %vm393 = vcmp.gt.f32.partialorder %v392, 0.5
  %v394 = vsel %vm382, 1, 0
  %v395 = vsel %vm383, 1, 0
  %v396 = vsel %vm384, 1, 0
  %v397 = vsel %vm385, 1, 0
  %v398 = vsel %vm386, 1, 0
  %v399 = vsel %vm387, 1, 0
  %v400 = vsel %vm388, 1, 0
  %v401 = vsel %vm389, 1, 0
  %v402 = vsel %vm390, 1, 0
  %v403 = vsel %vm391, 1, 0
  %404 = vset.pattern.permute.xlu0 0
  %405 = vperm.xlu0 %404, %v394
  %v406 = vpop.permute.xlu0 %405
  %407 = vset.pattern.permute.xlu0 0
  %408 = vperm.xlu0 %407, %v395
  %v409 = vpop.permute.xlu0 %408
  %410 = vset.pattern.permute.xlu0 0
  %411 = vperm.xlu0 %410, %v396
  %v412 = vpop.permute.xlu0 %411
  %413 = vset.pattern.permute.xlu0 0
  %414 = vperm.xlu0 %413, %v397
  %v415 = vpop.permute.xlu0 %414
  %416 = vset.pattern.permute.xlu0 0
  %417 = vperm.xlu0 %416, %v398
  %v418 = vpop.permute.xlu0 %417
  %419 = vset.pattern.permute.xlu0 0
  %420 = vperm.xlu0 %419, %v399
  %v421 = vpop.permute.xlu0 %420
  %422 = vset.pattern.permute.xlu0 0
  %423 = vperm.xlu0 %422, %v400
  %v424 = vpop.permute.xlu0 %423
  %425 = vset.pattern.permute.xlu0 0
  %426 = vperm.xlu0 %425, %v401
  %v427 = vpop.permute.xlu0 %426
  %428 = vset.pattern.permute.xlu0 0
  %429 = vperm.xlu0 %428, %v402
  %v430 = vpop.permute.xlu0 %429
  %431 = vset.pattern.permute.xlu0 0
  %432 = vperm.xlu0 %431, %v403
  %v433 = vpop.permute.xlu0 %432
  %vm434 = vcmp.eq.s32.totalorder %v406, 1
  %vm435 = vcmp.eq.s32.totalorder %v409, 1
  %vm436 = vcmp.eq.s32.totalorder %v412, 1
  %vm437 = vcmp.eq.s32.totalorder %v415, 1
  %vm438 = vcmp.eq.s32.totalorder %v418, 1
  %vm439 = vcmp.eq.s32.totalorder %v421, 1
  %vm440 = vcmp.eq.s32.totalorder %v424, 1
  %vm441 = vcmp.eq.s32.totalorder %v427, 1
  %vm442 = vcmp.eq.s32.totalorder %v430, 1
  %vm443 = vcmp.eq.s32.totalorder %v433, 1
  %v444 = vsel %vm393, 1, 0
  %v445 = vlaneseq
  %v446 = vshrl.u32 %v445, 7
  %v447 = vsub.s32 0, %v446
  %v448 = vrot.slane %v444, %v447
  %v449 = vlaneseq
  %v450 = vshrl.u32 %v449, 7
  %v451 = vsub.s32 1, %v450
  %v452 = vrot.slane %v444, %v451
  %v453 = vlaneseq
  %v454 = vshrl.u32 %v453, 7
  %v455 = vsub.s32 2, %v454
  %v456 = vrot.slane %v444, %v455
  %v457 = vlaneseq
  %v458 = vshrl.u32 %v457, 7
  %v459 = vsub.s32 3, %v458
  %v460 = vrot.slane %v444, %v459
  %v461 = vlaneseq
  %v462 = vshrl.u32 %v461, 7
  %v463 = vsub.s32 4, %v462
  %v464 = vrot.slane %v444, %v463
  %vm465 = vcmp.eq.s32.totalorder %v448, 1
  %vm466 = vcmp.eq.s32.totalorder %v452, 1
  %vm467 = vcmp.eq.s32.totalorder %v456, 1
  %vm468 = vcmp.eq.s32.totalorder %v460, 1
  %vm469 = vcmp.eq.s32.totalorder %v464, 1
  %vm470 = vmand %vm434, %vm465
  %vm471 = vmand %vm434, %vm466
  %vm472 = vmand %vm434, %vm467
  %vm473 = vmand %vm434, %vm468
  %vm474 = vmand %vm434, %vm469
  %vm475 = vmand %vm435, %vm465
  %vm476 = vmand %vm435, %vm466
  %vm477 = vmand %vm435, %vm467
  %vm478 = vmand %vm435, %vm468
  %vm479 = vmand %vm435, %vm469
  %vm480 = vmand %vm436, %vm465
  %vm481 = vmand %vm436, %vm466
  %vm482 = vmand %vm436, %vm467
  %vm483 = vmand %vm436, %vm468
  %vm484 = vmand %vm436, %vm469
  %vm485 = vmand %vm437, %vm465
  %vm486 = vmand %vm437, %vm466
  %vm487 = vmand %vm437, %vm467
  %vm488 = vmand %vm437, %vm468
  %vm489 = vmand %vm437, %vm469
  %vm490 = vmand %vm438, %vm465
  %vm491 = vmand %vm438, %vm466
  %vm492 = vmand %vm438, %vm467
  %vm493 = vmand %vm438, %vm468
  %vm494 = vmand %vm438, %vm469
  %vm495 = vmand %vm439, %vm465
  %vm496 = vmand %vm439, %vm466
  %vm497 = vmand %vm439, %vm467
  %vm498 = vmand %vm439, %vm468
  %vm499 = vmand %vm439, %vm469
  %vm500 = vmand %vm440, %vm465
  %vm501 = vmand %vm440, %vm466
  %vm502 = vmand %vm440, %vm467
  %vm503 = vmand %vm440, %vm468
  %vm504 = vmand %vm440, %vm469
  %vm505 = vmand %vm441, %vm465
  %vm506 = vmand %vm441, %vm466
  %vm507 = vmand %vm441, %vm467
  %vm508 = vmand %vm441, %vm468
  %vm509 = vmand %vm441, %vm469
  %vm510 = vmand %vm442, %vm465
  %vm511 = vmand %vm442, %vm466
  %vm512 = vmand %vm442, %vm467
  %vm513 = vmand %vm442, %vm468
  %vm514 = vmand %vm442, %vm469
  %vm515 = vmand %vm443, %vm465
  %vm516 = vmand %vm443, %vm466
  %vm517 = vmand %vm443, %vm467
  %vm518 = vmand %vm443, %vm468
  %vm519 = vmand %vm443, %vm469
  %v520 = vsel %vm470, %v168, -1.0
  %v521 = vsel %vm471, %v170, -1.0
  %v522 = vsel %vm472, %v251, -1.0
  %v523 = vsel %vm473, %v253, -1.0
  %v524 = vsel %vm474, %v334, -1.0
  %v525 = vsel %vm475, %v172, -1.0
  %v526 = vsel %vm476, %v174, -1.0
  %v527 = vsel %vm477, %v255, -1.0
  %v528 = vsel %vm478, %v257, -1.0
  %v529 = vsel %vm479, %v337, -1.0
  %v530 = vsel %vm480, %v178, -1.0
  %v531 = vsel %vm481, %v180, -1.0
  %v532 = vsel %vm482, %v261, -1.0
  %v533 = vsel %vm483, %v263, -1.0
  %v534 = vsel %vm484, %v342, -1.0
  %v535 = vsel %vm485, %v182, -1.0
  %v536 = vsel %vm486, %v184, -1.0
  %v537 = vsel %vm487, %v265, -1.0
  %v538 = vsel %vm488, %v267, -1.0
  %v539 = vsel %vm489, %v345, -1.0
  %v540 = vsel %vm490, %v188, -1.0
  %v541 = vsel %vm491, %v190, -1.0
  %v542 = vsel %vm492, %v271, -1.0
  %v543 = vsel %vm493, %v273, -1.0
  %v544 = vsel %vm494, %v350, -1.0
  %v545 = vsel %vm495, %v192, -1.0
  %v546 = vsel %vm496, %v194, -1.0
  %v547 = vsel %vm497, %v275, -1.0
  %v548 = vsel %vm498, %v277, -1.0
  %v549 = vsel %vm499, %v353, -1.0
  %v550 = vsel %vm500, %v198, -1.0
  %v551 = vsel %vm501, %v200, -1.0
  %v552 = vsel %vm502, %v281, -1.0
  %v553 = vsel %vm503, %v283, -1.0
  %v554 = vsel %vm504, %v358, -1.0
  %v555 = vsel %vm505, %v202, -1.0
  %v556 = vsel %vm506, %v204, -1.0
  %v557 = vsel %vm507, %v285, -1.0
  %v558 = vsel %vm508, %v287, -1.0
  %v559 = vsel %vm509, %v361, -1.0
  %v560 = vsel %vm510, %v208, -1.0
  %v561 = vsel %vm511, %v210, -1.0
  %v562 = vsel %vm512, %v291, -1.0
  %v563 = vsel %vm513, %v293, -1.0
  %v564 = vsel %vm514, %v366, -1.0
  %v565 = vsel %vm515, %v212, -1.0
  %v566 = vsel %vm516, %v214, -1.0
  %v567 = vsel %vm517, %v295, -1.0
  %v568 = vsel %vm518, %v297, -1.0
  %v569 = vsel %vm519, %v369, -1.0
  %v570 = vpack.c.bf16 %v525, %v520
  %v571 = vpack.c.bf16 %v526, %v521
  %v572 = vpack.c.bf16 %v527, %v522
  %v573 = vpack.c.bf16 %v528, %v523
  %v574 = vpack.c.bf16 %v529, %v524
  %v575 = vpack.c.bf16 %v535, %v530
  %v576 = vpack.c.bf16 %v536, %v531
  %v577 = vpack.c.bf16 %v537, %v532
  %v578 = vpack.c.bf16 %v538, %v533
  %v579 = vpack.c.bf16 %v539, %v534
  %v580 = vpack.c.bf16 %v545, %v540
  %v581 = vpack.c.bf16 %v546, %v541
  %v582 = vpack.c.bf16 %v547, %v542
  %v583 = vpack.c.bf16 %v548, %v543
  %v584 = vpack.c.bf16 %v549, %v544
  %v585 = vpack.c.bf16 %v555, %v550
  %v586 = vpack.c.bf16 %v556, %v551
  %v587 = vpack.c.bf16 %v557, %v552
  %v588 = vpack.c.bf16 %v558, %v553
  %v589 = vpack.c.bf16 %v559, %v554
  %v590 = vpack.c.bf16 %v565, %v560
  %v591 = vpack.c.bf16 %v566, %v561
  %v592 = vpack.c.bf16 %v567, %v562
  %v593 = vpack.c.bf16 %v568, %v563
  %v594 = vpack.c.bf16 %v569, %v564
  %v620 = vunpack.c.l.b16 %v570
  %v621 = vunpack.c.l.b16 %v571
  %v622 = vunpack.c.l.b16 %v572
  %v623 = vunpack.c.l.b16 %v573
  %v624 = vunpack.c.l.b16 %v574
  %v625 = vunpack.c.h.b16 %v570
  %v626 = vunpack.c.h.b16 %v571
  %v627 = vunpack.c.h.b16 %v572
  %v628 = vunpack.c.h.b16 %v573
  %v629 = vunpack.c.h.b16 %v574
  %v630 = vunpack.c.l.b16 %v575
  %v631 = vunpack.c.l.b16 %v576
  %v632 = vunpack.c.l.b16 %v577
  %v633 = vunpack.c.l.b16 %v578
  %v634 = vunpack.c.l.b16 %v579
  %v635 = vunpack.c.h.b16 %v575
  %v636 = vunpack.c.h.b16 %v576
  %v637 = vunpack.c.h.b16 %v577
  %v638 = vunpack.c.h.b16 %v578
  %v639 = vunpack.c.h.b16 %v579
  %v640 = vunpack.c.l.b16 %v580
  %v641 = vunpack.c.l.b16 %v581
  %v642 = vunpack.c.l.b16 %v582
  %v643 = vunpack.c.l.b16 %v583
  %v644 = vunpack.c.l.b16 %v584
  %v645 = vunpack.c.h.b16 %v580
  %v646 = vunpack.c.h.b16 %v581
  %v647 = vunpack.c.h.b16 %v582
  %v648 = vunpack.c.h.b16 %v583
  %v649 = vunpack.c.h.b16 %v584
  %v650 = vunpack.c.l.b16 %v585
  %v651 = vunpack.c.l.b16 %v586
  %v652 = vunpack.c.l.b16 %v587
  %v653 = vunpack.c.l.b16 %v588
  %v654 = vunpack.c.l.b16 %v589
  %v655 = vunpack.c.h.b16 %v585
  %v656 = vunpack.c.h.b16 %v586
  %v657 = vunpack.c.h.b16 %v587
  %v658 = vunpack.c.h.b16 %v588
  %v659 = vunpack.c.h.b16 %v589
  %v660 = vunpack.c.l.b16 %v590
  %v661 = vunpack.c.l.b16 %v591
  %v662 = vunpack.c.l.b16 %v592
  %v663 = vunpack.c.l.b16 %v593
  %v664 = vunpack.c.l.b16 %v594
  %v665 = vunpack.c.h.b16 %v590
  %v666 = vunpack.c.h.b16 %v591
  %v667 = vunpack.c.h.b16 %v592
  %v668 = vunpack.c.h.b16 %v593
  %v669 = vunpack.c.h.b16 %v594
  %v670 = vpack.c.b16 %v621, %v620
  %v671 = vpack.c.b16 %v623, %v622
  %v672 = vpack.c.b16 %v624, %v624
  %v673 = vpack.c.b16 %v626, %v625
  %v674 = vpack.c.b16 %v628, %v627
  %v675 = vpack.c.b16 %v629, %v629
  %v676 = vpack.c.b16 %v631, %v630
  %v677 = vpack.c.b16 %v633, %v632
  %v678 = vpack.c.b16 %v634, %v634
  %v679 = vpack.c.b16 %v636, %v635
  %v680 = vpack.c.b16 %v638, %v637
  %v681 = vpack.c.b16 %v639, %v639
  %v682 = vpack.c.b16 %v641, %v640
  %v683 = vpack.c.b16 %v643, %v642
  %v684 = vpack.c.b16 %v644, %v644
  %v685 = vpack.c.b16 %v646, %v645
  %v686 = vpack.c.b16 %v648, %v647
  %v687 = vpack.c.b16 %v649, %v649
  %v688 = vpack.c.b16 %v651, %v650
  %v689 = vpack.c.b16 %v653, %v652
  %v690 = vpack.c.b16 %v654, %v654
  %v691 = vpack.c.b16 %v656, %v655
  %v692 = vpack.c.b16 %v658, %v657
  %v693 = vpack.c.b16 %v659, %v659
  %v694 = vpack.c.b16 %v661, %v660
  %v695 = vpack.c.b16 %v663, %v662
  %v696 = vpack.c.b16 %v664, %v664
  %v697 = vpack.c.b16 %v666, %v665
  %v698 = vpack.c.b16 %v668, %v667
  %v699 = vpack.c.b16 %v669, %v669
  %730 = vst [vmem:[%s4] sm:$0xff] %v670
  %731 = vst [vmem:[%s4 + $0x8] sm:$0xff] %v671
  %732 = vst [vmem:[%s4 + $0x10] sm:$0xf] %v672
  %733 = vst [vmem:[%s4 + $0x14] sm:$0xff] %v673
  %734 = vst [vmem:[%s4 + $0x1c] sm:$0xff] %v674
  %735 = vst [vmem:[%s4 + $0x24] sm:$0xf] %v675
  %736 = vst [vmem:[%s4 + $0x28] sm:$0xff] %v676
  %737 = vst [vmem:[%s4 + $0x30] sm:$0xff] %v677
  %738 = vst [vmem:[%s4 + $0x38] sm:$0xf] %v678
  %739 = vst [vmem:[%s4 + $0x3c] sm:$0xff] %v679
  %740 = vst [vmem:[%s4 + $0x44] sm:$0xff] %v680
  %741 = vst [vmem:[%s4 + $0x4c] sm:$0xf] %v681
  %742 = vst [vmem:[%s4 + $0x50] sm:$0xff] %v682
  %743 = vst [vmem:[%s4 + $0x58] sm:$0xff] %v683
  %744 = vst [vmem:[%s4 + $0x60] sm:$0xf] %v684
  %745 = vst [vmem:[%s4 + $0x64] sm:$0xff] %v685
  %746 = vst [vmem:[%s4 + $0x6c] sm:$0xff] %v686
  %747 = vst [vmem:[%s4 + $0x74] sm:$0xf] %v687
  %748 = vst [vmem:[%s4 + $0x78] sm:$0xff] %v688
  %749 = vst [vmem:[%s4 + $0x80] sm:$0xff] %v689
  %750 = vst [vmem:[%s4 + $0x88] sm:$0xf] %v690
  %751 = vst [vmem:[%s4 + $0x8c] sm:$0xff] %v691
  %752 = vst [vmem:[%s4 + $0x94] sm:$0xff] %v692
  %753 = vst [vmem:[%s4 + $0x9c] sm:$0xf] %v693
  %754 = vst [vmem:[%s4 + $0xa0] sm:$0xff] %v694
  %755 = vst [vmem:[%s4 + $0xa8] sm:$0xff] %v695
  %756 = vst [vmem:[%s4 + $0xb0] sm:$0xf] %v696
  %757 = vst [vmem:[%s4 + $0xb4] sm:$0xff] %v697
  %758 = vst [vmem:[%s4 + $0xbc] sm:$0xff] %v698
  %759 = vst [vmem:[%s4 + $0xc4] sm:$0xf] %v699
  // Predicated region
  $region18: #{wunsch_line_matcher.2} parent=0 // pred_check
    _
  $region19: #{wunsch_line_matcher.2} parent=0 // pred_check_branch
    %761 = sbr.rel (0) target = $region21
  $region20: #{wunsch_line_matcher.2} parent=0 // pred_region
    _
  $region21: #{wunsch_line_matcher.2} parent=0 // pred_fallthru
    _
  // Predicated region
  $region22: #{wunsch_line_matcher.2} parent=0 // pred_check
    _
  $region23: #{wunsch_line_matcher.2} parent=0 // pred_check_branch
    %763 = sbr.rel (0) target = $region25
  $region24: #{wunsch_line_matcher.2} parent=0 // pred_region
    _
  $region25: #{wunsch_line_matcher.2} parent=0 // pred_fallthru
    _

// kernel: reverse
$region0: #{reverse}
  %s0 = inlined_call_operand.vmem [shape: s32[6,8], index: 0, kind: input, shape index: {}]
  %s1 = inlined_call_operand.vmem [shape: s32[6,8], index: 1, kind: output, shape index: {}]
  %v2 = vlaneseq
  %v3 = vsub.s32 7, %v2
  %4 = vset.pattern.permute.xlu0 %v3
  $region1: #{reverse} parent=0
    #allocation0 [shape = 'u8[4096]{0}', space=vmem, size = 0x1000, scoped, tag = 'operand span for operand 0']
    #allocation1 [shape = 'u8[4096]{0}', space=vmem, size = 0x1000, scoped, tag = 'operand span for operand 1']
    // Predicated region
    $region2: #{reverse} parent=1 // pred_check
      _
    $region3: #{reverse} parent=1 // pred_check_branch
      %6 = sbr.rel (0) target = $region5
    $region4: #{reverse} parent=1 // pred_region
      // Predicated region
      $region6: #{reverse} parent=4 // pred_check
        _
      $region7: #{reverse} parent=4 // pred_check_branch
        %8 = sbr.rel (0) target = $region9
      $region8: #{reverse} parent=4 // pred_region
        // Predicated region
        $region21: #{reverse} parent=8 // pred_check
          _
        $region22: #{reverse} parent=8 // pred_check_branch
          %23 = sbr.rel (0) target = $region24
        $region23: #{reverse} parent=8 // pred_region
          loop: start=0, step=1, limit=1
          $region25: #{reverse} parent=23 // loop_pre_header
            _
          $region26: #{reverse} parent=23 // loop_header
            %s25 = sphi 0, %s29
            %p26 = scmp.ge.s32.totalorder %s25, 1
            %s30 = sphi %s0, %s0
            %s31 = sphi [#allocation0], [#allocation0]
          $region27: #{reverse} parent=23 // loop_header_branch
            %28 = sbr.rel (%p26) target = $region31
          $region28: #{reverse} parent=23 // loop_body
            %v32 = vld [vmem:[%s30] sm:$0xff]
            %33 = vst [vmem:[%s31] sm:$0xff] %v32
          $region29: #{reverse} parent=23 // loop_footer
            %s29 = sadd.s32 1, %s25
          $region30: #{reverse} parent=23 // loop_footer_branch
            %24 = sbr.rel target = $region26
          $region31: #{reverse} parent=23 // loop_exit
            _
        $region24: #{reverse} parent=8 // pred_fallthru
          _
        // Predicated region
        $region32: #{reverse} parent=8 // pred_check
          _
        $region33: #{reverse} parent=8 // pred_check_branch
          %35 = sbr.rel target = $region35
        $region34: #{reverse} parent=8 // pred_region
          _
        $region35: #{reverse} parent=8 // pred_fallthru
          _
      $region9: #{reverse} parent=4 // pred_fallthru
        _
      // Predicated region
      $region10: #{reverse} parent=4 // pred_check
        _
      $region11: #{reverse} parent=4 // pred_check_branch
        %10 = sbr.rel target = $region13
      $region12: #{reverse} parent=4 // pred_region
        loop: start=0, step=1, limit=1
        $region14: #{reverse} parent=12 // loop_pre_header
          _
        $region15: #{reverse} parent=12 // loop_header
          %s13 = sphi 0, %s17
          %p14 = scmp.ge.s32.totalorder %s13, 1
          %s18 = sphi %s0, %s0
          %s19 = sphi [#allocation0], [#allocation0]
        $region16: #{reverse} parent=12 // loop_header_branch
          %16 = sbr.rel (%p14) target = $region20
        $region17: #{reverse} parent=12 // loop_body
          %v20 = vld [vmem:[%s18] sm:$0xff]
          %21 = vst [vmem:[%s19] sm:$0xff] %v20
        $region18: #{reverse} parent=12 // loop_footer
          %s17 = sadd.s32 1, %s13
        $region19: #{reverse} parent=12 // loop_footer_branch
          %12 = sbr.rel target = $region15
        $region20: #{reverse} parent=12 // loop_exit
          _
      $region13: #{reverse} parent=4 // pred_fallthru
        _
    $region5: #{reverse} parent=1 // pred_fallthru
      _
    %36 = vnop
    %v37 = vld [vmem:[#allocation0] sm:$0xff]
    %38 = vperm.xlu0 %4, %v37
    %v39 = vpop.permute.xlu0 %38
    %40 = vst [vmem:[#allocation1] sm:$0xff] %v39
    // Predicated region
    $region36: #{reverse} parent=1 // pred_check
      _
    $region37: #{reverse} parent=1 // pred_check_branch
      %42 = sbr.rel (0) target = $region39
    $region38: #{reverse} parent=1 // pred_region
      // Predicated region
      $region40: #{reverse} parent=38 // pred_check
        _
      $region41: #{reverse} parent=38 // pred_check_branch
        %44 = sbr.rel (0) target = $region43
      $region42: #{reverse} parent=38 // pred_region
        // Predicated region
        $region55: #{reverse} parent=42 // pred_check
          _
        $region56: #{reverse} parent=42 // pred_check_branch
          %59 = sbr.rel (0) target = $region58
        $region57: #{reverse} parent=42 // pred_region
          loop: start=0, step=1, limit=1
          $region59: #{reverse} parent=57 // loop_pre_header
            _
          $region60: #{reverse} parent=57 // loop_header
            %s61 = sphi 0, %s65
            %p62 = scmp.ge.s32.totalorder %s61, 1
            %s66 = sphi [#allocation1], [#allocation1]
            %s67 = sphi %s1, %s1
          $region61: #{reverse} parent=57 // loop_header_branch
            %64 = sbr.rel (%p62) target = $region65
          $region62: #{reverse} parent=57 // loop_body
            %v68 = vld [vmem:[%s66] sm:$0xff]
            %69 = vst [vmem:[%s67] sm:$0xff] %v68
          $region63: #{reverse} parent=57 // loop_footer
            %s65 = sadd.s32 1, %s61
          $region64: #{reverse} parent=57 // loop_footer_branch
            %60 = sbr.rel target = $region60
          $region65: #{reverse} parent=57 // loop_exit
            _
        $region58: #{reverse} parent=42 // pred_fallthru
          _
        // Predicated region
        $region66: #{reverse} parent=42 // pred_check
          _
        $region67: #{reverse} parent=42 // pred_check_branch
          %71 = sbr.rel target = $region69
        $region68: #{reverse} parent=42 // pred_region
          _
        $region69: #{reverse} parent=42 // pred_fallthru
          _
      $region43: #{reverse} parent=38 // pred_fallthru
        _
      // Predicated region
      $region44: #{reverse} parent=38 // pred_check
        _
      $region45: #{reverse} parent=38 // pred_check_branch
        %46 = sbr.rel target = $region47
      $region46: #{reverse} parent=38 // pred_region
        loop: start=0, step=1, limit=1
        $region48: #{reverse} parent=46 // loop_pre_header
          _
        $region49: #{reverse} parent=46 // loop_header
          %s49 = sphi 0, %s53
          %p50 = scmp.ge.s32.totalorder %s49, 1
          %s54 = sphi [#allocation1], [#allocation1]
          %s55 = sphi %s1, %s1
        $region50: #{reverse} parent=46 // loop_header_branch
          %52 = sbr.rel (%p50) target = $region54
        $region51: #{reverse} parent=46 // loop_body
          %v56 = vld [vmem:[%s54] sm:$0xff]
          %57 = vst [vmem:[%s55] sm:$0xff] %v56
        $region52: #{reverse} parent=46 // loop_footer
          %s53 = sadd.s32 1, %s49
        $region53: #{reverse} parent=46 // loop_footer_branch
          %48 = sbr.rel target = $region49
        $region54: #{reverse} parent=46 // loop_exit
          _
      $region47: #{reverse} parent=38 // pred_fallthru
        _
    $region39: #{reverse} parent=1 // pred_fallthru
      _
    %72 = vnop

// kernel: reverse.1
$region0: #{reverse.1}
  %s0 = inlined_call_operand.vmem [shape: s32[8,6], index: 0, kind: input, shape index: {}]
  %s1 = inlined_call_operand.vmem [shape: s32[8,6], index: 1, kind: output, shape index: {}]
  $region1: #{reverse.1} parent=0
    #allocation0 [shape = 'u8[8192]{0}', space=vmem, size = 0x2000, scoped, tag = 'operand span for operand 0']
    #allocation1 [shape = 'u8[4096]{0}', space=vmem, size = 0x1000, scoped, tag = 'operand span for operand 1']
    %s2 = scalar_lea.vmem [#allocation0], 8
    // Predicated region
    $region2: #{reverse.1} parent=1 // pred_check
      _
    $region3: #{reverse.1} parent=1 // pred_check_branch
      %4 = sbr.rel (0) target = $region5
    $region4: #{reverse.1} parent=1 // pred_region
      // Predicated region
      $region6: #{reverse.1} parent=4 // pred_check
        _
      $region7: #{reverse.1} parent=4 // pred_check_branch
        %6 = sbr.rel (0) target = $region9
      $region8: #{reverse.1} parent=4 // pred_region
        // Predicated region
        $region21: #{reverse.1} parent=8 // pred_check
          _
        $region22: #{reverse.1} parent=8 // pred_check_branch
          %21 = sbr.rel (0) target = $region24
        $region23: #{reverse.1} parent=8 // pred_region
          loop: start=0, step=1, limit=1
          $region25: #{reverse.1} parent=23 // loop_pre_header
            _
          $region26: #{reverse.1} parent=23 // loop_header
            %s23 = sphi 0, %s27
            %p24 = scmp.ge.s32.totalorder %s23, 1
            %s28 = sphi %s0, %s0
            %s29 = sphi %s2, %s2
          $region27: #{reverse.1} parent=23 // loop_header_branch
            %26 = sbr.rel (%p24) target = $region31
          $region28: #{reverse.1} parent=23 // loop_body
            %v30 = vld [vmem:[%s28] sm:$0xff]
            %31 = vst [vmem:[%s29] sm:$0xff] %v30
          $region29: #{reverse.1} parent=23 // loop_footer
            %s27 = sadd.s32 1, %s23
          $region30: #{reverse.1} parent=23 // loop_footer_branch
            %22 = sbr.rel target = $region26
          $region31: #{reverse.1} parent=23 // loop_exit
            _
        $region24: #{reverse.1} parent=8 // pred_fallthru
          _
        // Predicated region
        $region32: #{reverse.1} parent=8 // pred_check
          _
        $region33: #{reverse.1} parent=8 // pred_check_branch
          %33 = sbr.rel target = $region35
        $region34: #{reverse.1} parent=8 // pred_region
          _
        $region35: #{reverse.1} parent=8 // pred_fallthru
          _
      $region9: #{reverse.1} parent=4 // pred_fallthru
        _
      // Predicated region
      $region10: #{reverse.1} parent=4 // pred_check
        _
      $region11: #{reverse.1} parent=4 // pred_check_branch
        %8 = sbr.rel target = $region13
      $region12: #{reverse.1} parent=4 // pred_region
        loop: start=0, step=1, limit=1
        $region14: #{reverse.1} parent=12 // loop_pre_header
          _
        $region15: #{reverse.1} parent=12 // loop_header
          %s11 = sphi 0, %s15
          %p12 = scmp.ge.s32.totalorder %s11, 1
          %s16 = sphi %s0, %s0
          %s17 = sphi %s2, %s2
        $region16: #{reverse.1} parent=12 // loop_header_branch
          %14 = sbr.rel (%p12) target = $region20
        $region17: #{reverse.1} parent=12 // loop_body
          %v18 = vld [vmem:[%s16] sm:$0xff]
          %19 = vst [vmem:[%s17] sm:$0xff] %v18
        $region18: #{reverse.1} parent=12 // loop_footer
          %s15 = sadd.s32 1, %s11
        $region19: #{reverse.1} parent=12 // loop_footer_branch
          %10 = sbr.rel target = $region15
        $region20: #{reverse.1} parent=12 // loop_exit
          _
      $region13: #{reverse.1} parent=4 // pred_fallthru
        _
    $region5: #{reverse.1} parent=1 // pred_fallthru
      _
    %34 = vnop
    %s35 = scalar_lea.vmem [#allocation0], 7
    %v36 = vld [vmem:[%s35] ss:$-1 sm:$0xff]
    %v37 = vrot.slane %v36, 2
    %38 = vst [vmem:[#allocation1] sm:$0xff] %v37
    %s39 = scalar_lea.vmem [#allocation0], 8
    %s40 = scalar_lea.vmem %s39, 7 [#allocation0]
    %v41 = vld [vmem:[%s40] ss:$-1 sm:$0xff]
    %v42 = vrot.slane %v41, 2
    %v43 = vlaneseq
    %v44 = vshrl.u32 %v43, 7
    %vm45 = vcmp.lt.s32.totalorder %v44, 6
    %46 = vst.msk [vmem:[#allocation1] sm:$0xff] %vm45, %v42
    // Predicated region
    $region36: #{reverse.1} parent=1 // pred_check
      _
    $region37: #{reverse.1} parent=1 // pred_check_branch
      %48 = sbr.rel (0) target = $region39
    $region38: #{reverse.1} parent=1 // pred_region
      // Predicated region
      $region40: #{reverse.1} parent=38 // pred_check
        _
      $region41: #{reverse.1} parent=38 // pred_check_branch
        %50 = sbr.rel (0) target = $region43
      $region42: #{reverse.1} parent=38 // pred_region
        // Predicated region
        $region55: #{reverse.1} parent=42 // pred_check
          _
        $region56: #{reverse.1} parent=42 // pred_check_branch
          %65 = sbr.rel (0) target = $region58
        $region57: #{reverse.1} parent=42 // pred_region
          loop: start=0, step=1, limit=1
          $region59: #{reverse.1} parent=57 // loop_pre_header
            _
          $region60: #{reverse.1} parent=57 // loop_header
            %s67 = sphi 0, %s71
            %p68 = scmp.ge.s32.totalorder %s67, 1
            %s72 = sphi [#allocation1], [#allocation1]
            %s73 = sphi %s1, %s1
          $region61: #{reverse.1} parent=57 // loop_header_branch
            %70 = sbr.rel (%p68) target = $region65
          $region62: #{reverse.1} parent=57 // loop_body
            %v74 = vld [vmem:[%s72] sm:$0xff]
            %75 = vst [vmem:[%s73] sm:$0xff] %v74
          $region63: #{reverse.1} parent=57 // loop_footer
            %s71 = sadd.s32 1, %s67
          $region64: #{reverse.1} parent=57 // loop_footer_branch
            %66 = sbr.rel target = $region60
          $region65: #{reverse.1} parent=57 // loop_exit
            _
        $region58: #{reverse.1} parent=42 // pred_fallthru
          _
        // Predicated region
        $region66: #{reverse.1} parent=42 // pred_check
          _
        $region67: #{reverse.1} parent=42 // pred_check_branch
          %77 = sbr.rel target = $region69
        $region68: #{reverse.1} parent=42 // pred_region
          _
        $region69: #{reverse.1} parent=42 // pred_fallthru
          _
      $region43: #{reverse.1} parent=38 // pred_fallthru
        _
      // Predicated region
      $region44: #{reverse.1} parent=38 // pred_check
        _
      $region45: #{reverse.1} parent=38 // pred_check_branch
        %52 = sbr.rel target = $region47
      $region46: #{reverse.1} parent=38 // pred_region
        loop: start=0, step=1, limit=1
        $region48: #{reverse.1} parent=46 // loop_pre_header
          _
        $region49: #{reverse.1} parent=46 // loop_header
          %s55 = sphi 0, %s59
          %p56 = scmp.ge.s32.totalorder %s55, 1
          %s60 = sphi [#allocation1], [#allocation1]
          %s61 = sphi %s1, %s1
        $region50: #{reverse.1} parent=46 // loop_header_branch
          %58 = sbr.rel (%p56) target = $region54
        $region51: #{reverse.1} parent=46 // loop_body
          %v62 = vld [vmem:[%s60] sm:$0xff]
          %63 = vst [vmem:[%s61] sm:$0xff] %v62
        $region52: #{reverse.1} parent=46 // loop_footer
          %s59 = sadd.s32 1, %s55
        $region53: #{reverse.1} parent=46 // loop_footer_branch
          %54 = sbr.rel target = $region49
        $region54: #{reverse.1} parent=46 // loop_exit
          _
      $region47: #{reverse.1} parent=38 // pred_fallthru
        _
    $region39: #{reverse.1} parent=1 // pred_fallthru
      _
    %78 = vnop

// kernel: wunsch_line_matcher.3
$region0: #{wunsch_line_matcher.3}
  #allocation0 [shape = 'u32[]', space=smem, size = 0x4, offset = 0x4, fixed_abs, tag = 'smem constant byte address 0x4 - core index']
  #allocation1 [shape = 'u32[144,128]{1,0:T(1,128)}', space=vmem, size = 0x12000, scoped, tag = 'internal scratch']
  %s0 = inlined_call_operand.vmem [shape: f32[25,8,128], index: 0, kind: input, shape index: {}]
  %s1 = inlined_call_operand.vmem [shape: f32[2,8,128], index: 1, kind: output, shape index: {}]
  %s2 = sld [smem:[#allocation0]]
  $region14: #{wunsch_line_matcher.3} parent=0
    _
  %s4 = ssub.s32 1, %s2
  %s5 = scalar_select 0, %s4, %s2
  // Predicated region
  $region2: #{wunsch_line_matcher.3} parent=0 // pred_check
    _
  $region3: #{wunsch_line_matcher.3} parent=0 // pred_check_branch
    %7 = sbr.rel (0) target = $region5
  $region4: #{wunsch_line_matcher.3} parent=0 // pred_region
    _
  $region5: #{wunsch_line_matcher.3} parent=0 // pred_fallthru
    _
  %v8 = vld [vmem:[%s0] sm:$0xff]
  %v9 = vsub.f32 %v8, 0.1
  %s10 = sadd.s32 0, 32
  %s11 = scalar_lea.vmem %s0, %s10
  %v12 = vld [vmem:[%s11] sm:$0xff]
  %v13 = vsub.f32 %v12, 0.1
  %v14 = vadd.f32 %v9, 0.0
  %v15 = vmax.f32 %v14, 0.0
  %v16 = vadd.f32 %v13, 0.0
  %v17 = vmax.f32 %v16, 0.0
  %s18 = sadd.s32 0, 8
  %s19 = scalar_lea.vmem %s0, %s18
  %v20 = vld [vmem:[%s19] sm:$0xff]
  %v21 = vsub.f32 %v20, 0.1
  %s22 = sadd.s32 0, 24
  %s23 = scalar_lea.vmem %s0, %s22
  %v24 = vld [vmem:[%s23] sm:$0xff]
  %v25 = vsub.f32 %v24, 0.1
  %v26 = vmax.f32 %v15, 0.0
  %v27 = vadd.f32 %v21, 0.0
  %v28 = vmax.f32 %v26, %v27
  %v29 = vmax.f32 %v17, 0.0
  %v30 = vadd.f32 %v25, 0.0
  %v31 = vmax.f32 %v29, %v30
  %s32 = sadd.s32 0, 16
  %s33 = scalar_lea.vmem %s0, %s32
  %v34 = vld [vmem:[%s33] sm:$0xff]
  %v35 = vsub.f32 %v34, 0.1
  %v36 = vmax.f32 %v28, 0.0
  %v37 = vadd.f32 %v35, 0.0
  %v38 = vmax.f32 %v36, %v37
  %v39 = vmax.f32 %v31, 0.0
  %v40 = vmax.f32 %v39, %v37
  %v41 = vmax.f32 %v38, 0.0
  %v42 = vmax.f32 %v41, %v30
  %v43 = vmax.f32 %v40, 0.0
  %v44 = vmax.f32 %v43, %v27
  %v45 = vmax.f32 %v42, 0.0
  %v46 = vmax.f32 %v45, %v16
  %v47 = vmax.f32 %v44, 0.0
  %v48 = vmax.f32 %v47, %v14
  %s49 = sadd.s32 0, 40
  %s50 = scalar_lea.vmem %s0, %s49
  %v51 = vld [vmem:[%s50] sm:$0xff]
  %v52 = vsub.f32 %v51, 0.1
  %s53 = sadd.s32 0, 72
  %s54 = scalar_lea.vmem %s0, %s53
  %v55 = vld [vmem:[%s54] sm:$0xff]
  %v56 = vsub.f32 %v55, 0.1
  %v57 = vadd.f32 %v52, 0.0
  %v58 = vmax.f32 %v26, %v57
  %v59 = vadd.f32 %v56, 0.0
  %v60 = vmax.f32 %v29, %v59
  %s61 = sadd.s32 0, 48
  %s62 = scalar_lea.vmem %s0, %s61
  %v63 = vld [vmem:[%s62] sm:$0xff]
  %v64 = vsub.f32 %v63, 0.1
  %s65 = sadd.s32 0, 64
  %s66 = scalar_lea.vmem %s0, %s65
  %v67 = vld [vmem:[%s66] sm:$0xff]
  %v68 = vsub.f32 %v67, 0.1
  %v69 = vmax.f32 %v58, %v28
  %v70 = vadd.f32 %v15, %v64
  %v71 = vmax.f32 %v69, %v70
  %v72 = vmax.f32 %v60, %v31
  %v73 = vadd.f32 %v17, %v68
  %v74 = vmax.f32 %v72, %v73
  %s75 = sadd.s32 0, 56
  %s76 = scalar_lea.vmem %s0, %s75
  %v77 = vld [vmem:[%s76] sm:$0xff]
  %v78 = vsub.f32 %v77, 0.1
  %v79 = vmax.f32 %v71, %v38
  %v80 = vadd.f32 %v28, %v78
  %v81 = vmax.f32 %v79, %v80
  %v82 = vmax.f32 %v74, %v40
  %v83 = vadd.f32 %v31, %v78
  %v84 = vmax.f32 %v82, %v83
  %v85 = vmax.f32 %v81, %v42
  %v86 = vadd.f32 %v38, %v68
  %v87 = vmax.f32 %v85, %v86
  %v88 = vmax.f32 %v84, %v44
  %v89 = vadd.f32 %v40, %v64
  %v90 = vmax.f32 %v88, %v89
  %v91 = vmax.f32 %v87, %v46
  %v92 = vadd.f32 %v42, %v56
  %v93 = vmax.f32 %v91, %v92
  %v94 = vmax.f32 %v90, %v48
  %v95 = vadd.f32 %v44, %v52
  %v96 = vmax.f32 %v94, %v95
  %s97 = sadd.s32 0, 80
  %s98 = scalar_lea.vmem %s0, %s97
  %v99 = vld [vmem:[%s98] sm:$0xff]
  %v100 = vsub.f32 %v99, 0.1
  %s101 = sadd.s32 0, 112
  %s102 = scalar_lea.vmem %s0, %s101
  %v103 = vld [vmem:[%s102] sm:$0xff]
  %v104 = vsub.f32 %v103, 0.1
  %v105 = vmax.f32 %v58, 0.0
  %v106 = vadd.f32 %v100, 0.0
  %v107 = vmax.f32 %v105, %v106
  %v108 = vmax.f32 %v60, 0.0
  %v109 = vadd.f32 %v104, 0.0
  %v110 = vmax.f32 %v108, %v109
  %s111 = sadd.s32 0, 88
  %s112 = scalar_lea.vmem %s0, %s111
  %v113 = vld [vmem:[%s112] sm:$0xff]
  %v114 = vsub.f32 %v113, 0.1
  %s115 = sadd.s32 0, 104
  %s116 = scalar_lea.vmem %s0, %s115
  %v117 = vld [vmem:[%s116] sm:$0xff]
  %v118 = vsub.f32 %v117, 0.1
  %v119 = vmax.f32 %v107, %v71
  %v120 = vadd.f32 %v58, %v114
  %v121 = vmax.f32 %v119, %v120
  %v122 = vmax.f32 %v110, %v74
  %v123 = vadd.f32 %v60, %v118
  %v124 = vmax.f32 %v122, %v123
  %s125 = sadd.s32 0, 96
  %s126 = scalar_lea.vmem %s0, %s125
  %v127 = vld [vmem:[%s126] sm:$0xff]
  %v128 = vsub.f32 %v127, 0.1
  %v129 = vmax.f32 %v121, %v81
  %v130 = vadd.f32 %v71, %v128
  %v131 = vmax.f32 %v129, %v130
  %v132 = vmax.f32 %v124, %v84
  %v133 = vadd.f32 %v74, %v128
  %v134 = vmax.f32 %v132, %v133
  %v135 = vmax.f32 %v131, %v87
  %v136 = vadd.f32 %v81, %v118
  %v137 = vmax.f32 %v135, %v136
  %v138 = vmax.f32 %v134, %v90
  %v139 = vadd.f32 %v84, %v114
  %v140 = vmax.f32 %v138, %v139
  %v141 = vmax.f32 %v137, %v93
  %v142 = vadd.f32 %v87, %v104
  %v143 = vmax.f32 %v141, %v142
  %v144 = vmax.f32 %v140, %v96
  %v145 = vadd.f32 %v90, %v100
  %v146 = vmax.f32 %v144, %v145
  %s147 = sadd.s32 0, 120
  %s148 = scalar_lea.vmem %s0, %s147
  %v149 = vld [vmem:[%s148] sm:$0xff]
  %v150 = vsub.f32 %v149, 0.1
  %s151 = sadd.s32 0, 152
  %s152 = scalar_lea.vmem %s0, %s151
  %v153 = vld [vmem:[%s152] sm:$0xff]
  %v154 = vsub.f32 %v153, 0.1
  %v155 = vmax.f32 %v107, 0.0
  %v156 = vadd.f32 %v150, 0.0
  %v157 = vmax.f32 %v155, %v156
  %v158 = vmax.f32 %v110, 0.0
  %v159 = vadd.f32 %v154, 0.0
  %v160 = vmax.f32 %v158, %v159
  %s161 = sadd.s32 0, 128
  %s162 = scalar_lea.vmem %s0, %s161
  %v163 = vld [vmem:[%s162] sm:$0xff]
  %v164 = vsub.f32 %v163, 0.1
  %s165 = sadd.s32 0, 144
  %s166 = scalar_lea.vmem %s0, %s165
  %v167 = vld [vmem:[%s166] sm:$0xff]
  %v168 = vsub.f32 %v167, 0.1
  %v169 = vmax.f32 %v157, %v121
  %v170 = vadd.f32 %v107, %v164
  %v171 = vmax.f32 %v169, %v170
  %v172 = vmax.f32 %v160, %v124
  %v173 = vadd.f32 %v110, %v168
  %v174 = vmax.f32 %v172, %v173
  %s175 = sadd.s32 0, 136
  %s176 = scalar_lea.vmem %s0, %s175
  %v177 = vld [vmem:[%s176] sm:$0xff]
  %v178 = vsub.f32 %v177, 0.1
  %v179 = vmax.f32 %v171, %v131
  %v180 = vadd.f32 %v121, %v178
  %v181 = vmax.f32 %v179, %v180
  %v182 = vmax.f32 %v174, %v134
  %v183 = vadd.f32 %v124, %v178
  %v184 = vmax.f32 %v182, %v183
  %v185 = vmax.f32 %v181, %v137
  %v186 = vadd.f32 %v131, %v168
  %v187 = vmax.f32 %v185, %v186
  %v188 = vmax.f32 %v184, %v140
  %v189 = vadd.f32 %v134, %v164
  %v190 = vmax.f32 %v188, %v189
  %v191 = vmax.f32 %v187, %v143
  %v192 = vadd.f32 %v137, %v154
  %v193 = vmax.f32 %v191, %v192
  %v194 = vmax.f32 %v190, %v146
  %v195 = vadd.f32 %v140, %v150
  %v196 = vmax.f32 %v194, %v195
  %s197 = sadd.s32 0, 160
  %s198 = scalar_lea.vmem %s0, %s197
  %v199 = vld [vmem:[%s198] sm:$0xff]
  %v200 = vsub.f32 %v199, 0.1
  %s201 = sadd.s32 0, 192
  %s202 = scalar_lea.vmem %s0, %s201
  %v203 = vld [vmem:[%s202] sm:$0xff]
  %v204 = vsub.f32 %v203, 0.1
  %v205 = vmax.f32 %v157, 0.0
  %v206 = vadd.f32 %v200, 0.0
  %v207 = vmax.f32 %v205, %v206
  %v208 = vmax.f32 %v160, 0.0
  %v209 = vadd.f32 %v204, 0.0
  %v210 = vmax.f32 %v208, %v209
  %s211 = sadd.s32 0, 168
  %s212 = scalar_lea.vmem %s0, %s211
  %v213 = vld [vmem:[%s212] sm:$0xff]
  %v214 = vsub.f32 %v213, 0.1
  %s215 = sadd.s32 0, 184
  %s216 = scalar_lea.vmem %s0, %s215
  %v217 = vld [vmem:[%s216] sm:$0xff]
  %v218 = vsub.f32 %v217, 0.1
  %v219 = vmax.f32 %v207, %v171
  %v220 = vadd.f32 %v157, %v214
  %v221 = vmax.f32 %v219, %v220
  %v222 = vmax.f32 %v210, %v174
  %v223 = vadd.f32 %v160, %v218
  %v224 = vmax.f32 %v222, %v223
  %s225 = sadd.s32 0, 176
  %s226 = scalar_lea.vmem %s0, %s225
  %v227 = vld [vmem:[%s226] sm:$0xff]
  %v228 = vsub.f32 %v227, 0.1
  %v229 = vmax.f32 %v221, %v181
  %v230 = vadd.f32 %v171, %v228
  %v231 = vmax.f32 %v229, %v230
  %v232 = vmax.f32 %v224, %v184
  %v233 = vadd.f32 %v174, %v228
  %v234 = vmax.f32 %v232, %v233
  %v235 = vmax.f32 %v231, %v187
  %v236 = vadd.f32 %v181, %v218
  %v237 = vmax.f32 %v235, %v236
  %v238 = vmax.f32 %v234, %v190
  %v239 = vadd.f32 %v184, %v214
  %v240 = vmax.f32 %v238, %v239
  %v241 = vmax.f32 %v237, %v193
  %v242 = vadd.f32 %v187, %v204
  %v243 = vmax.f32 %v241, %v242
  %v244 = vmax.f32 %v240, %v196
  %v245 = vadd.f32 %v190, %v200
  %v246 = vmax.f32 %v244, %v245
  %247 = vst [vmem:[%s1] sm:$0xff] %v243
  %s248 = scalar_lea.vmem %s1, %s18
  %249 = vst [vmem:[%s248] sm:$0xff] %v246
  // Predicated region
  $region6: #{wunsch_line_matcher.3} parent=0 // pred_check
    _
  $region7: #{wunsch_line_matcher.3} parent=0 // pred_check_branch
    %251 = sbr.rel (0) target = $region9
  $region8: #{wunsch_line_matcher.3} parent=0 // pred_region
    _
  $region9: #{wunsch_line_matcher.3} parent=0 // pred_fallthru
    _
  // Predicated region
  $region10: #{wunsch_line_matcher.3} parent=0 // pred_check
    _
  $region11: #{wunsch_line_matcher.3} parent=0 // pred_check_branch
    %253 = sbr.rel (0) target = $region13
  $region12: #{wunsch_line_matcher.3} parent=0 // pred_region
    _
  $region13: #{wunsch_line_matcher.3} parent=0 // pred_fallthru
    _

</llo_original>
